<compile_context>
chip_gen: v5e
topology: v5e:2x2
jax: 0.10.0
libtpu: 0.0.40
codegen_flags: <defaults>
</compile_context>

<pallas_src>
import jax
import jax.numpy as jnp
from jax.experimental import pallas as pl
from jax.experimental.pallas import tpu as pltpu

EPS = 1e-5   # nn.BatchNorm2d default eps
LANE = 128   # TPU lane width


def frelu_kernel(x_ref, w_ref, b_ref, g_ref, be_ref, o_ref, xp_ref):
    """One grid step = one channel block, full (N, H, W) spatial extent.

    Layout: channels on lanes (last dim), W on sublanes.
      x_ref : (N, H, W, Cb)      input block
      w_ref : (9, Cb)            depthwise 3x3 taps, row t = tap (t//3, t%3)
      b_ref : (1, Cb)            conv bias
      g_ref : (1, Cb)            BN gamma
      be_ref: (1, Cb)            BN beta
      o_ref : (N, H, W, Cb)      output block
      xp_ref: (N, H+2, W+2, Cb)  VMEM scratch: zero-padded input plane
    """
    N, H, W, Cb = x_ref.shape

    # Build the zero-padded plane in VMEM (no extra HBM traffic).
    xp_ref[...] = jnp.zeros_like(xp_ref)
    xp_ref[:, 1:H + 1, 1:W + 1, :] = x_ref[...].astype(jnp.float32)

    # Depthwise 3x3 conv: 9 shifted reads straight from the scratch ref
    # (address offsets along N/H, small sublane shifts along W, lane-vector
    # weight broadcasts -- no lane rotates, no scalar splats).
    acc = xp_ref[:, 0:H, 0:W, :] * w_ref[0, :]
    for t in range(1, 9):
        dh, dw = t // 3, t % 3
        acc = acc + xp_ref[:, dh:dh + H, dw:dw + W, :] * w_ref[t, :]
    y = acc + b_ref[0, :]

    # BatchNorm2d forward (module default = training mode): batch mean and
    # biased variance over (N, H, W) per channel.  Exact because one grid
    # step holds the whole channel plane.
    inv_cnt = 1.0 / float(N * H * W)
    m = jnp.sum(y, axis=(0, 1, 2), keepdims=True) * inv_cnt          # (1,1,1,Cb)
    v = jnp.sum((y - m) ** 2, axis=(0, 1, 2), keepdims=True) * inv_cnt
    y_bn = (y - m) * jax.lax.rsqrt(v + EPS) * g_ref[0, :] + be_ref[0, :]

    x_f32 = xp_ref[:, 1:H + 1, 1:W + 1, :]   # interior == x (already f32)
    o_ref[...] = jnp.maximum(x_f32, y_bn).astype(o_ref.dtype)


def _choose_cblk(N, H, W, c_pad):
    """Largest channel block (multiple of 128) that fits a conservative VMEM
    budget while keeping >= 2 grid steps when possible (v7x has 2 TCs and
    only 64 MiB VMEM, so budget is sized well below its 32 MiB scoped cap)."""
    # f32 bytes per channel per step: in + out (double-buffered) + halo scratch
    per_c = (2 * 2 * N * H * W + N * (H + 2) * (W + 2)) * 4
    budget = 16 * 1024 * 1024
    cblk = LANE
    while (c_pad % (2 * cblk) == 0
           and per_c * (2 * cblk) <= budget
           and c_pad // (2 * cblk) >= 2):
        cblk *= 2
    return cblk


@jax.jit
def frelu(x, conv_w, conv_b, gamma, beta):
    """x: (N, C, H, W); conv_w: (C, 1, 3, 3); conv_b/gamma/beta: (C,)."""
    N, C, H, W = x.shape
    c_pad = ((C + LANE - 1) // LANE) * LANE
    c_blk = _choose_cblk(N, H, W, c_pad)

    # NCHW -> NHWC so channels sit on the 128-wide lane axis; pad C to a
    # multiple of 128.  Padded channels have zero weights/gamma/beta, stay
    # identically zero (no NaNs), and are sliced off below.
    x_t = jnp.transpose(x, (0, 2, 3, 1))
    if c_pad != C:
        x_t = jnp.pad(x_t, ((0, 0), (0, 0), (0, 0), (0, c_pad - C)))

    def pad_c(p):  # pad the channel (last) axis of a 2-D param array
        return jnp.pad(p, ((0, 0), (0, c_pad - C))) if c_pad != C else p

    w_l = pad_c(conv_w.reshape(C, 9).T.astype(jnp.float32))     # (9, c_pad)
    b_l = pad_c(conv_b.reshape(1, C).astype(jnp.float32))       # (1, c_pad)
    g_l = pad_c(gamma.reshape(1, C).astype(jnp.float32))        # (1, c_pad)
    be_l = pad_c(beta.reshape(1, C).astype(jnp.float32))        # (1, c_pad)

    out_t = pl.pallas_call(
        frelu_kernel,
        out_shape=jax.ShapeDtypeStruct((N, H, W, c_pad), x.dtype),
        grid_spec=pltpu.PrefetchScalarGridSpec(
            num_scalar_prefetch=0,
            grid=(c_pad // c_blk,),
            in_specs=[
                pl.BlockSpec((N, H, W, c_blk), lambda c: (0, 0, 0, c)),
                pl.BlockSpec((9, c_blk), lambda c: (0, c)),
                pl.BlockSpec((1, c_blk), lambda c: (0, c)),
                pl.BlockSpec((1, c_blk), lambda c: (0, c)),
                pl.BlockSpec((1, c_blk), lambda c: (0, c)),
            ],
            out_specs=pl.BlockSpec((N, H, W, c_blk), lambda c: (0, 0, 0, c)),
            scratch_shapes=[
                pltpu.VMEM((N, H + 2, W + 2, c_blk), jnp.float32)],
        ),
        compiler_params=pltpu.CompilerParams(
            dimension_semantics=("parallel",),
            vmem_limit_bytes=32 * 1024 * 1024,
        ),
    )(x_t, w_l, b_l, g_l, be_l)

    return jnp.transpose(out_t[..., :C], (0, 3, 1, 2))


def frelu_reference(x, conv_w, conv_b, gamma, beta):
    """Pure-JAX reference mirroring the PyTorch module forward."""
    C = x.shape[1]
    y = jax.lax.conv_general_dilated(
        x, conv_w, window_strides=(1, 1), padding=((1, 1), (1, 1)),
        dimension_numbers=("NCHW", "OIHW", "NCHW"), feature_group_count=C)
    y = y + conv_b[None, :, None, None]
    m = jnp.mean(y, axis=(0, 2, 3), keepdims=True)
    v = jnp.mean((y - m) ** 2, axis=(0, 2, 3), keepdims=True)
    y_bn = (y - m) * jax.lax.rsqrt(v + EPS) * gamma[None, :, None, None] \
        + beta[None, :, None, None]
    return jnp.maximum(x, y_bn)


if __name__ == "__main__":
    key = jax.random.PRNGKey(0)
    k_x, k_w, k_b, k_g, k_be = jax.random.split(key, 5)

    N, C, H, W = 2, 4, 16, 16
    x = jax.random.normal(k_x, (N, C, H, W), dtype=jnp.float32)
    # Deterministic synthetic parameters (nn.Conv2d(c1, c1, 3, 1, 1, groups=c1),
    # nn.BatchNorm2d(c1)); not loaded from a checkpoint.
    conv_w = 0.1 * jax.random.normal(k_w, (C, 1, 3, 3), dtype=jnp.float32)
    conv_b = 0.05 * jax.random.normal(k_b, (C,), dtype=jnp.float32)
    gamma = 1.0 + 0.1 * jax.random.normal(k_g, (C,), dtype=jnp.float32)
    beta = 0.1 * jax.random.normal(k_be, (C,), dtype=jnp.float32)

    out = frelu(x, conv_w, conv_b, gamma, beta)
    out = jax.block_until_ready(out)

    ref = frelu_reference(x, conv_w, conv_b, gamma, beta)
    assert out.shape == (N, C, H, W) and out.dtype == x.dtype
    assert jnp.allclose(out, ref, atol=1e-4, rtol=1e-4), "mismatch vs reference"

    print("KERNEL_OK")
</pallas_src>

<mosaic_0001>
module attributes {stable_mosaic.version = 11 : i64} {
  func.func @frelu_kernel(%arg0: i32, %arg1: memref<2x16x16x128xf32, #tpu.memory_space<vmem>>, %arg2: memref<9x128xf32, #tpu.memory_space<vmem>>, %arg3: memref<1x128xf32, #tpu.memory_space<vmem>>, %arg4: memref<1x128xf32, #tpu.memory_space<vmem>>, %arg5: memref<1x128xf32, #tpu.memory_space<vmem>>, %arg6: memref<2x16x16x128xf32, #tpu.memory_space<vmem>>, %arg7: memref<2x18x18x128xf32, #tpu.memory_space<vmem>>) attributes {dimension_semantics = [#tpu.dimension_semantics<parallel>], iteration_bounds = array<i64: 1>, scalar_prefetch = 0 : i64, scratch_operands = 1 : i64, tpu.core_type = #tpu.core_type<tc>, window_params = [{transform_indices = @transform_0, window_bounds = array<i64: 2, 16, 16, 128>}, {transform_indices = @transform_1, window_bounds = array<i64: 9, 128>}, {transform_indices = @transform_2, window_bounds = array<i64: 1, 128>}, {transform_indices = @transform_3, window_bounds = array<i64: 1, 128>}, {transform_indices = @transform_4, window_bounds = array<i64: 1, 128>}, {transform_indices = @transform_5, window_bounds = array<i64: 2, 16, 16, 128>}]} {
    %cst = arith.constant 0.000000e+00 : f32
    %0 = vector.broadcast %cst : f32 to vector<2x18x18x128xf32>
    %c0 = arith.constant 0 : index
    %c0_0 = arith.constant 0 : index
    %c0_1 = arith.constant 0 : index
    %c0_2 = arith.constant 0 : index
    %1 = vector.load %arg7[%c0, %c0_0, %c0_1, %c0_2] : memref<2x18x18x128xf32, #tpu.memory_space<vmem>>, vector<2x18x18x128xf32>
    tpu.vector_store %arg7[%c0, %c0_0, %c0_1, %c0_2], %0 {strides = array<i32>} : memref<2x18x18x128xf32, #tpu.memory_space<vmem>>, vector<2x18x18x128xf32>,
    %c0_3 = arith.constant 0 : index
    %c0_4 = arith.constant 0 : index
    %c0_5 = arith.constant 0 : index
    %c0_6 = arith.constant 0 : index
    %2 = vector.load %arg1[%c0_3, %c0_4, %c0_5, %c0_6] : memref<2x16x16x128xf32, #tpu.memory_space<vmem>>, vector<2x16x16x128xf32>
    %c0_7 = arith.constant 0 : index
    %c1 = arith.constant 1 : index
    %c1_8 = arith.constant 1 : index
    %c0_9 = arith.constant 0 : index
    %3 = vector.load %arg7[%c0_7, %c1, %c1_8, %c0_9] : memref<2x18x18x128xf32, #tpu.memory_space<vmem>>, vector<2x16x16x128xf32>
    tpu.vector_store %arg7[%c0_7, %c1, %c1_8, %c0_9], %2 {strides = array<i32>} : memref<2x18x18x128xf32, #tpu.memory_space<vmem>>, vector<2x16x16x128xf32>,
    %c0_10 = arith.constant 0 : index
    %c0_11 = arith.constant 0 : index
    %c0_12 = arith.constant 0 : index
    %c0_13 = arith.constant 0 : index
    %4 = vector.load %arg7[%c0_10, %c0_11, %c0_12, %c0_13] : memref<2x18x18x128xf32, #tpu.memory_space<vmem>>, vector<2x16x16x128xf32>
    %c0_14 = arith.constant 0 : index
    %c0_15 = arith.constant 0 : index
    %5 = vector.load %arg2[%c0_14, %c0_15] : memref<9x128xf32, #tpu.memory_space<vmem>>, vector<1x128xf32>
    %6 = vector.shape_cast %5 : vector<1x128xf32> to vector<128xf32>
    %7 = vector.shape_cast %6 : vector<128xf32> to vector<1x1x1x128xf32>
    %8 = vector.broadcast %7 : vector<1x1x1x128xf32> to vector<2x16x16x128xf32>
    %9 = arith.mulf %4, %8 : vector<2x16x16x128xf32>
    %c0_16 = arith.constant 0 : index
    %c0_17 = arith.constant 0 : index
    %c1_18 = arith.constant 1 : index
    %c0_19 = arith.constant 0 : index
    %10 = vector.load %arg7[%c0_16, %c0_17, %c1_18, %c0_19] : memref<2x18x18x128xf32, #tpu.memory_space<vmem>>, vector<2x16x16x128xf32>
    %c1_20 = arith.constant 1 : index
    %c0_21 = arith.constant 0 : index
    %11 = vector.load %arg2[%c1_20, %c0_21] : memref<9x128xf32, #tpu.memory_space<vmem>>, vector<1x128xf32>
    %12 = vector.shape_cast %11 : vector<1x128xf32> to vector<128xf32>
    %13 = vector.shape_cast %12 : vector<128xf32> to vector<1x1x1x128xf32>
    %14 = vector.broadcast %13 : vector<1x1x1x128xf32> to vector<2x16x16x128xf32>
    %15 = arith.mulf %10, %14 : vector<2x16x16x128xf32>
    %16 = arith.addf %9, %15 : vector<2x16x16x128xf32>
    %c0_22 = arith.constant 0 : index
    %c0_23 = arith.constant 0 : index
    %c2 = arith.constant 2 : index
    %c0_24 = arith.constant 0 : index
    %17 = vector.load %arg7[%c0_22, %c0_23, %c2, %c0_24] : memref<2x18x18x128xf32, #tpu.memory_space<vmem>>, vector<2x16x16x128xf32>
    %c2_25 = arith.constant 2 : index
    %c0_26 = arith.constant 0 : index
    %18 = vector.load %arg2[%c2_25, %c0_26] : memref<9x128xf32, #tpu.memory_space<vmem>>, vector<1x128xf32>
    %19 = vector.shape_cast %18 : vector<1x128xf32> to vector<128xf32>
    %20 = vector.shape_cast %19 : vector<128xf32> to vector<1x1x1x128xf32>
    %21 = vector.broadcast %20 : vector<1x1x1x128xf32> to vector<2x16x16x128xf32>
    %22 = arith.mulf %17, %21 : vector<2x16x16x128xf32>
    %23 = arith.addf %16, %22 : vector<2x16x16x128xf32>
    %c0_27 = arith.constant 0 : index
    %c1_28 = arith.constant 1 : index
    %c0_29 = arith.constant 0 : index
    %c0_30 = arith.constant 0 : index
    %24 = vector.load %arg7[%c0_27, %c1_28, %c0_29, %c0_30] : memref<2x18x18x128xf32, #tpu.memory_space<vmem>>, vector<2x16x16x128xf32>
    %c3 = arith.constant 3 : index
    %c0_31 = arith.constant 0 : index
    %25 = vector.load %arg2[%c3, %c0_31] : memref<9x128xf32, #tpu.memory_space<vmem>>, vector<1x128xf32>
    %26 = vector.shape_cast %25 : vector<1x128xf32> to vector<128xf32>
    %27 = vector.shape_cast %26 : vector<128xf32> to vector<1x1x1x128xf32>
    %28 = vector.broadcast %27 : vector<1x1x1x128xf32> to vector<2x16x16x128xf32>
    %29 = arith.mulf %24, %28 : vector<2x16x16x128xf32>
    %30 = arith.addf %23, %29 : vector<2x16x16x128xf32>
    %c0_32 = arith.constant 0 : index
    %c1_33 = arith.constant 1 : index
    %c1_34 = arith.constant 1 : index
    %c0_35 = arith.constant 0 : index
    %31 = vector.load %arg7[%c0_32, %c1_33, %c1_34, %c0_35] : memref<2x18x18x128xf32, #tpu.memory_space<vmem>>, vector<2x16x16x128xf32>
    %c4 = arith.constant 4 : index
    %c0_36 = arith.constant 0 : index
    %32 = vector.load %arg2[%c4, %c0_36] : memref<9x128xf32, #tpu.memory_space<vmem>>, vector<1x128xf32>
    %33 = vector.shape_cast %32 : vector<1x128xf32> to vector<128xf32>
    %34 = vector.shape_cast %33 : vector<128xf32> to vector<1x1x1x128xf32>
    %35 = vector.broadcast %34 : vector<1x1x1x128xf32> to vector<2x16x16x128xf32>
    %36 = arith.mulf %31, %35 : vector<2x16x16x128xf32>
    %37 = arith.addf %30, %36 : vector<2x16x16x128xf32>
    %c0_37 = arith.constant 0 : index
    %c1_38 = arith.constant 1 : index
    %c2_39 = arith.constant 2 : index
    %c0_40 = arith.constant 0 : index
    %38 = vector.load %arg7[%c0_37, %c1_38, %c2_39, %c0_40] : memref<2x18x18x128xf32, #tpu.memory_space<vmem>>, vector<2x16x16x128xf32>
    %c5 = arith.constant 5 : index
    %c0_41 = arith.constant 0 : index
    %39 = vector.load %arg2[%c5, %c0_41] : memref<9x128xf32, #tpu.memory_space<vmem>>, vector<1x128xf32>
    %40 = vector.shape_cast %39 : vector<1x128xf32> to vector<128xf32>
    %41 = vector.shape_cast %40 : vector<128xf32> to vector<1x1x1x128xf32>
    %42 = vector.broadcast %41 : vector<1x1x1x128xf32> to vector<2x16x16x128xf32>
    %43 = arith.mulf %38, %42 : vector<2x16x16x128xf32>
    %44 = arith.addf %37, %43 : vector<2x16x16x128xf32>
    %c0_42 = arith.constant 0 : index
    %c2_43 = arith.constant 2 : index
    %c0_44 = arith.constant 0 : index
    %c0_45 = arith.constant 0 : index
    %45 = vector.load %arg7[%c0_42, %c2_43, %c0_44, %c0_45] : memref<2x18x18x128xf32, #tpu.memory_space<vmem>>, vector<2x16x16x128xf32>
    %c6 = arith.constant 6 : index
    %c0_46 = arith.constant 0 : index
    %46 = vector.load %arg2[%c6, %c0_46] : memref<9x128xf32, #tpu.memory_space<vmem>>, vector<1x128xf32>
    %47 = vector.shape_cast %46 : vector<1x128xf32> to vector<128xf32>
    %48 = vector.shape_cast %47 : vector<128xf32> to vector<1x1x1x128xf32>
    %49 = vector.broadcast %48 : vector<1x1x1x128xf32> to vector<2x16x16x128xf32>
    %50 = arith.mulf %45, %49 : vector<2x16x16x128xf32>
    %51 = arith.addf %44, %50 : vector<2x16x16x128xf32>
    %c0_47 = arith.constant 0 : index
    %c2_48 = arith.constant 2 : index
    %c1_49 = arith.constant 1 : index
    %c0_50 = arith.constant 0 : index
    %52 = vector.load %arg7[%c0_47, %c2_48, %c1_49, %c0_50] : memref<2x18x18x128xf32, #tpu.memory_space<vmem>>, vector<2x16x16x128xf32>
    %c7 = arith.constant 7 : index
    %c0_51 = arith.constant 0 : index
    %53 = vector.load %arg2[%c7, %c0_51] : memref<9x128xf32, #tpu.memory_space<vmem>>, vector<1x128xf32>
    %54 = vector.shape_cast %53 : vector<1x128xf32> to vector<128xf32>
    %55 = vector.shape_cast %54 : vector<128xf32> to vector<1x1x1x128xf32>
    %56 = vector.broadcast %55 : vector<1x1x1x128xf32> to vector<2x16x16x128xf32>
    %57 = arith.mulf %52, %56 : vector<2x16x16x128xf32>
    %58 = arith.addf %51, %57 : vector<2x16x16x128xf32>
    %c0_52 = arith.constant 0 : index
    %c2_53 = arith.constant 2 : index
    %c2_54 = arith.constant 2 : index
    %c0_55 = arith.constant 0 : index
    %59 = vector.load %arg7[%c0_52, %c2_53, %c2_54, %c0_55] : memref<2x18x18x128xf32, #tpu.memory_space<vmem>>, vector<2x16x16x128xf32>
    %c8 = arith.constant 8 : index
    %c0_56 = arith.constant 0 : index
    %60 = vector.load %arg2[%c8, %c0_56] : memref<9x128xf32, #tpu.memory_space<vmem>>, vector<1x128xf32>
    %61 = vector.shape_cast %60 : vector<1x128xf32> to vector<128xf32>
    %62 = vector.shape_cast %61 : vector<128xf32> to vector<1x1x1x128xf32>
    %63 = vector.broadcast %62 : vector<1x1x1x128xf32> to vector<2x16x16x128xf32>
    %64 = arith.mulf %59, %63 : vector<2x16x16x128xf32>
    %65 = arith.addf %58, %64 : vector<2x16x16x128xf32>
    %c0_57 = arith.constant 0 : index
    %c0_58 = arith.constant 0 : index
    %66 = vector.load %arg3[%c0_57, %c0_58] : memref<1x128xf32, #tpu.memory_space<vmem>>, vector<1x128xf32>
    %67 = vector.shape_cast %66 : vector<1x128xf32> to vector<128xf32>
    %68 = vector.shape_cast %67 : vector<128xf32> to vector<1x1x1x128xf32>
    %69 = vector.broadcast %68 : vector<1x1x1x128xf32> to vector<2x16x16x128xf32>
    %70 = arith.addf %65, %69 : vector<2x16x16x128xf32>
    %cst_59 = arith.constant dense<0.000000e+00> : vector<128xf32>
    %71 = vector.multi_reduction <add>, %70, %cst_59 [0, 1, 2] : vector<2x16x16x128xf32> to vector<128xf32>
    %72 = vector.shape_cast %71 : vector<128xf32> to vector<1x1x1x128xf32>
    %cst_60 = arith.constant 0.001953125 : f32
    %73 = vector.broadcast %cst_60 : f32 to vector<1x1x1x128xf32>
    %74 = arith.mulf %72, %73 : vector<1x1x1x128xf32>
    %75 = vector.broadcast %74 : vector<1x1x1x128xf32> to vector<2x16x16x128xf32>
    %76 = arith.subf %70, %75 : vector<2x16x16x128xf32>
    %77 = arith.mulf %76, %76 : vector<2x16x16x128xf32>
    %cst_61 = arith.constant dense<0.000000e+00> : vector<128xf32>
    %78 = vector.multi_reduction <add>, %77, %cst_61 [0, 1, 2] : vector<2x16x16x128xf32> to vector<128xf32>
    %79 = vector.shape_cast %78 : vector<128xf32> to vector<1x1x1x128xf32>
    %cst_62 = arith.constant 0.001953125 : f32
    %80 = vector.broadcast %cst_62 : f32 to vector<1x1x1x128xf32>
    %81 = arith.mulf %79, %80 : vector<1x1x1x128xf32>
    %82 = vector.broadcast %74 : vector<1x1x1x128xf32> to vector<2x16x16x128xf32>
    %83 = arith.subf %70, %82 : vector<2x16x16x128xf32>
    %cst_63 = arith.constant 9.99999974E-6 : f32
    %84 = vector.broadcast %cst_63 : f32 to vector<1x1x1x128xf32>
    %85 = arith.addf %81, %84 : vector<1x1x1x128xf32>
    %86 = math.rsqrt %85 : vector<1x1x1x128xf32>
    %87 = vector.broadcast %86 : vector<1x1x1x128xf32> to vector<2x16x16x128xf32>
    %88 = arith.mulf %83, %87 : vector<2x16x16x128xf32>
    %c0_64 = arith.constant 0 : index
    %c0_65 = arith.constant 0 : index
    %89 = vector.load %arg4[%c0_64, %c0_65] : memref<1x128xf32, #tpu.memory_space<vmem>>, vector<1x128xf32>
    %90 = vector.shape_cast %89 : vector<1x128xf32> to vector<128xf32>
    %91 = vector.shape_cast %90 : vector<128xf32> to vector<1x1x1x128xf32>
    %92 = vector.broadcast %91 : vector<1x1x1x128xf32> to vector<2x16x16x128xf32>
    %93 = arith.mulf %88, %92 : vector<2x16x16x128xf32>
    %c0_66 = arith.constant 0 : index
    %c0_67 = arith.constant 0 : index
    %94 = vector.load %arg5[%c0_66, %c0_67] : memref<1x128xf32, #tpu.memory_space<vmem>>, vector<1x128xf32>
    %95 = vector.shape_cast %94 : vector<1x128xf32> to vector<128xf32>
    %96 = vector.shape_cast %95 : vector<128xf32> to vector<1x1x1x128xf32>
    %97 = vector.broadcast %96 : vector<1x1x1x128xf32> to vector<2x16x16x128xf32>
    %98 = arith.addf %93, %97 : vector<2x16x16x128xf32>
    %c0_68 = arith.constant 0 : index
    %c1_69 = arith.constant 1 : index
    %c1_70 = arith.constant 1 : index
    %c0_71 = arith.constant 0 : index
    %99 = vector.load %arg7[%c0_68, %c1_69, %c1_70, %c0_71] : memref<2x18x18x128xf32, #tpu.memory_space<vmem>>, vector<2x16x16x128xf32>
    %100 = arith.maximumf %99, %98 : vector<2x16x16x128xf32>
    %c0_72 = arith.constant 0 : index
    %c0_73 = arith.constant 0 : index
    %c0_74 = arith.constant 0 : index
    %c0_75 = arith.constant 0 : index
    %101 = vector.load %arg6[%c0_72, %c0_73, %c0_74, %c0_75] : memref<2x16x16x128xf32, #tpu.memory_space<vmem>>, vector<2x16x16x128xf32>
    tpu.vector_store %arg6[%c0_72, %c0_73, %c0_74, %c0_75], %100 {strides = array<i32>} : memref<2x16x16x128xf32, #tpu.memory_space<vmem>>, vector<2x16x16x128xf32>,
    return
  }
  func.func @transform_0(%arg0: i32) -> (i32, i32, i32, i32) {
    %c0_i32 = arith.constant 0 : i32
    %c0_i32_0 = arith.constant 0 : i32
    %c0_i32_1 = arith.constant 0 : i32
    %c0_i32_2 = arith.constant 0 : i32
    return %c0_i32, %c0_i32_0, %c0_i32_1, %arg0 : i32, i32, i32, i32
  }
  func.func @transform_1(%arg0: i32) -> (i32, i32) {
    %c0_i32 = arith.constant 0 : i32
    %c0_i32_0 = arith.constant 0 : i32
    return %c0_i32, %arg0 : i32, i32
  }
  func.func @transform_2(%arg0: i32) -> (i32, i32) {
    %c0_i32 = arith.constant 0 : i32
    %c0_i32_0 = arith.constant 0 : i32
    return %c0_i32, %arg0 : i32, i32
  }
  func.func @transform_3(%arg0: i32) -> (i32, i32) {
    %c0_i32 = arith.constant 0 : i32
    %c0_i32_0 = arith.constant 0 : i32
    return %c0_i32, %arg0 : i32, i32
  }
  func.func @transform_4(%arg0: i32) -> (i32, i32) {
    %c0_i32 = arith.constant 0 : i32
    %c0_i32_0 = arith.constant 0 : i32
    return %c0_i32, %arg0 : i32, i32
  }
  func.func @transform_5(%arg0: i32) -> (i32, i32, i32, i32) {
    %c0_i32 = arith.constant 0 : i32
    %c0_i32_0 = arith.constant 0 : i32
    %c0_i32_1 = arith.constant 0 : i32
    %c0_i32_2 = arith.constant 0 : i32
    return %c0_i32, %c0_i32_0, %c0_i32_1, %arg0 : i32, i32, i32, i32
  }
}

</mosaic_0001>

<llo_original>
// kernel: frelu.1
$region0: #{frelu.1}
  #allocation0 [shape = 'u32[]', space=smem, size = 0x4, offset = 0x4, fixed_abs, tag = 'smem constant byte address 0x4 - core index']
  #allocation1 [shape = 'u32[72,128]{1,0:T(1,128)}', space=vmem, size = 0x9000, scoped, tag = 'internal scratch']
  #allocation2 [shape = 'f32[2,18,18,128]{3,2,1,0:T(8,128)}', space=vmem, size = 0x6c000, scoped, tag = 'scratch operand']
  %s0 = inlined_call_operand.vmem [shape: f32[2,16,16,128], index: 0, kind: input, shape index: {}]
  %s1 = inlined_call_operand.vmem [shape: f32[9,128], index: 1, kind: input, shape index: {}]
  %s2 = inlined_call_operand.vmem [shape: f32[1,128], index: 2, kind: input, shape index: {}]
  %s3 = inlined_call_operand.vmem [shape: f32[1,128], index: 3, kind: input, shape index: {}]
  %s4 = inlined_call_operand.vmem [shape: f32[1,128], index: 4, kind: input, shape index: {}]
  %s5 = inlined_call_operand.vmem [shape: f32[2,16,16,128], index: 5, kind: output, shape index: {}]
  %s6 = sld [smem:[#allocation0]]
  $region30: #{frelu.1} parent=0
    _
  %s8 = ssub.s32 1, %s6
  %s9 = scalar_select 0, %s8, %s6
  // Predicated region
  $region2: #{frelu.1} parent=0 // pred_check
    _
  $region3: #{frelu.1} parent=0 // pred_check_branch
    %11 = sbr.rel (0) target = $region5
  $region4: #{frelu.1} parent=0 // pred_region
    _
  $region5: #{frelu.1} parent=0 // pred_fallthru
    _
  // Predicated region
  $region6: #{frelu.1} parent=0 // pred_check
    _
  $region7: #{frelu.1} parent=0 // pred_check_branch
    %13 = sbr.rel (0) target = $region9
  $region8: #{frelu.1} parent=0 // pred_region
    _
  $region9: #{frelu.1} parent=0 // pred_fallthru
    _
  // Predicated region
  $region10: #{frelu.1} parent=0 // pred_check
    _
  $region11: #{frelu.1} parent=0 // pred_check_branch
    %15 = sbr.rel (0) target = $region13
  $region12: #{frelu.1} parent=0 // pred_region
    _
  $region13: #{frelu.1} parent=0 // pred_fallthru
    _
  // Predicated region
  $region14: #{frelu.1} parent=0 // pred_check
    _
  $region15: #{frelu.1} parent=0 // pred_check_branch
    %17 = sbr.rel (0) target = $region17
  $region16: #{frelu.1} parent=0 // pred_region
    _
  $region17: #{frelu.1} parent=0 // pred_fallthru
    _
  // Predicated region
  $region18: #{frelu.1} parent=0 // pred_check
    _
  $region19: #{frelu.1} parent=0 // pred_check_branch
    %19 = sbr.rel (0) target = $region21
  $region20: #{frelu.1} parent=0 // pred_region
    _
  $region21: #{frelu.1} parent=0 // pred_fallthru
    _
  %20 = vst [vmem:[#allocation2] sm:$0xff] 0.0
  %21 = vst [vmem:[#allocation2 + $0x8] sm:$0xff] 0.0
  %22 = vst [vmem:[#allocation2 + $0x10] sm:$0x3] 0.0
  %23 = vst [vmem:[#allocation2 + $0x18] sm:$0xff] 0.0
  %24 = vst [vmem:[#allocation2 + $0x20] sm:$0xff] 0.0
  %25 = vst [vmem:[#allocation2 + $0x28] sm:$0x3] 0.0
  %26 = vst [vmem:[#allocation2 + $0x30] sm:$0xff] 0.0
  %27 = vst [vmem:[#allocation2 + $0x38] sm:$0xff] 0.0
  %28 = vst [vmem:[#allocation2 + $0x40] sm:$0x3] 0.0
  %29 = vst [vmem:[#allocation2 + $0x48] sm:$0xff] 0.0
  %30 = vst [vmem:[#allocation2 + $0x50] sm:$0xff] 0.0
  %31 = vst [vmem:[#allocation2 + $0x58] sm:$0x3] 0.0
  %32 = vst [vmem:[#allocation2 + $0x60] sm:$0xff] 0.0
  %33 = vst [vmem:[#allocation2 + $0x68] sm:$0xff] 0.0
  %34 = vst [vmem:[#allocation2 + $0x70] sm:$0x3] 0.0
  %35 = vst [vmem:[#allocation2 + $0x78] sm:$0xff] 0.0
  %36 = vst [vmem:[#allocation2 + $0x80] sm:$0xff] 0.0
  %37 = vst [vmem:[#allocation2 + $0x88] sm:$0x3] 0.0
  %38 = vst [vmem:[#allocation2 + $0x90] sm:$0xff] 0.0
  %39 = vst [vmem:[#allocation2 + $0x98] sm:$0xff] 0.0
  %40 = vst [vmem:[#allocation2 + $0xa0] sm:$0x3] 0.0
  %41 = vst [vmem:[#allocation2 + $0xa8] sm:$0xff] 0.0
  %42 = vst [vmem:[#allocation2 + $0xb0] sm:$0xff] 0.0
  %43 = vst [vmem:[#allocation2 + $0xb8] sm:$0x3] 0.0
  %44 = vst [vmem:[#allocation2 + $0xc0] sm:$0xff] 0.0
  %45 = vst [vmem:[#allocation2 + $0xc8] sm:$0xff] 0.0
  %46 = vst [vmem:[#allocation2 + $0xd0] sm:$0x3] 0.0
  %47 = vst [vmem:[#allocation2 + $0xd8] sm:$0xff] 0.0
  %48 = vst [vmem:[#allocation2 + $0xe0] sm:$0xff] 0.0
  %49 = vst [vmem:[#allocation2 + $0xe8] sm:$0x3] 0.0
  %50 = vst [vmem:[#allocation2 + $0xf0] sm:$0xff] 0.0
  %51 = vst [vmem:[#allocation2 + $0xf8] sm:$0xff] 0.0
  %52 = vst [vmem:[#allocation2 + $0x100] sm:$0x3] 0.0
  %53 = vst [vmem:[#allocation2 + $0x108] sm:$0xff] 0.0
  %54 = vst [vmem:[#allocation2 + $0x110] sm:$0xff] 0.0
  %55 = vst [vmem:[#allocation2 + $0x118] sm:$0x3] 0.0
  %56 = vst [vmem:[#allocation2 + $0x120] sm:$0xff] 0.0
  %57 = vst [vmem:[#allocation2 + $0x128] sm:$0xff] 0.0
  %58 = vst [vmem:[#allocation2 + $0x130] sm:$0x3] 0.0
  %59 = vst [vmem:[#allocation2 + $0x138] sm:$0xff] 0.0
  %60 = vst [vmem:[#allocation2 + $0x140] sm:$0xff] 0.0
  %61 = vst [vmem:[#allocation2 + $0x148] sm:$0x3] 0.0
  %62 = vst [vmem:[#allocation2 + $0x150] sm:$0xff] 0.0
  %63 = vst [vmem:[#allocation2 + $0x158] sm:$0xff] 0.0
  %64 = vst [vmem:[#allocation2 + $0x160] sm:$0x3] 0.0
  %65 = vst [vmem:[#allocation2 + $0x168] sm:$0xff] 0.0
  %66 = vst [vmem:[#allocation2 + $0x170] sm:$0xff] 0.0
  %67 = vst [vmem:[#allocation2 + $0x178] sm:$0x3] 0.0
  %68 = vst [vmem:[#allocation2 + $0x180] sm:$0xff] 0.0
  %69 = vst [vmem:[#allocation2 + $0x188] sm:$0xff] 0.0
  %70 = vst [vmem:[#allocation2 + $0x190] sm:$0x3] 0.0
  %71 = vst [vmem:[#allocation2 + $0x198] sm:$0xff] 0.0
  %72 = vst [vmem:[#allocation2 + $0x1a0] sm:$0xff] 0.0
  %73 = vst [vmem:[#allocation2 + $0x1a8] sm:$0x3] 0.0
  %74 = vst [vmem:[#allocation2 + $0x1b0] sm:$0xff] 0.0
  %75 = vst [vmem:[#allocation2 + $0x1b8] sm:$0xff] 0.0
  %76 = vst [vmem:[#allocation2 + $0x1c0] sm:$0x3] 0.0
  %77 = vst [vmem:[#allocation2 + $0x1c8] sm:$0xff] 0.0
  %78 = vst [vmem:[#allocation2 + $0x1d0] sm:$0xff] 0.0
  %79 = vst [vmem:[#allocation2 + $0x1d8] sm:$0x3] 0.0
  %80 = vst [vmem:[#allocation2 + $0x1e0] sm:$0xff] 0.0
  %81 = vst [vmem:[#allocation2 + $0x1e8] sm:$0xff] 0.0
  %82 = vst [vmem:[#allocation2 + $0x1f0] sm:$0x3] 0.0
  %83 = vst [vmem:[#allocation2 + $0x1f8] sm:$0xff] 0.0
  %84 = vst [vmem:[#allocation2 + $0x200] sm:$0xff] 0.0
  %85 = vst [vmem:[#allocation2 + $0x208] sm:$0x3] 0.0
  %86 = vst [vmem:[#allocation2 + $0x210] sm:$0xff] 0.0
  %87 = vst [vmem:[#allocation2 + $0x218] sm:$0xff] 0.0
  %88 = vst [vmem:[#allocation2 + $0x220] sm:$0x3] 0.0
  %89 = vst [vmem:[#allocation2 + $0x228] sm:$0xff] 0.0
  %90 = vst [vmem:[#allocation2 + $0x230] sm:$0xff] 0.0
  %91 = vst [vmem:[#allocation2 + $0x238] sm:$0x3] 0.0
  %92 = vst [vmem:[#allocation2 + $0x240] sm:$0xff] 0.0
  %93 = vst [vmem:[#allocation2 + $0x248] sm:$0xff] 0.0
  %94 = vst [vmem:[#allocation2 + $0x250] sm:$0x3] 0.0
  %95 = vst [vmem:[#allocation2 + $0x258] sm:$0xff] 0.0
  %96 = vst [vmem:[#allocation2 + $0x260] sm:$0xff] 0.0
  %97 = vst [vmem:[#allocation2 + $0x268] sm:$0x3] 0.0
  %98 = vst [vmem:[#allocation2 + $0x270] sm:$0xff] 0.0
  %99 = vst [vmem:[#allocation2 + $0x278] sm:$0xff] 0.0
  %100 = vst [vmem:[#allocation2 + $0x280] sm:$0x3] 0.0
  %101 = vst [vmem:[#allocation2 + $0x288] sm:$0xff] 0.0
  %102 = vst [vmem:[#allocation2 + $0x290] sm:$0xff] 0.0
  %103 = vst [vmem:[#allocation2 + $0x298] sm:$0x3] 0.0
  %104 = vst [vmem:[#allocation2 + $0x2a0] sm:$0xff] 0.0
  %105 = vst [vmem:[#allocation2 + $0x2a8] sm:$0xff] 0.0
  %106 = vst [vmem:[#allocation2 + $0x2b0] sm:$0x3] 0.0
  %107 = vst [vmem:[#allocation2 + $0x2b8] sm:$0xff] 0.0
  %108 = vst [vmem:[#allocation2 + $0x2c0] sm:$0xff] 0.0
  %109 = vst [vmem:[#allocation2 + $0x2c8] sm:$0x3] 0.0
  %110 = vst [vmem:[#allocation2 + $0x2d0] sm:$0xff] 0.0
  %111 = vst [vmem:[#allocation2 + $0x2d8] sm:$0xff] 0.0
  %112 = vst [vmem:[#allocation2 + $0x2e0] sm:$0x3] 0.0
  %113 = vst [vmem:[#allocation2 + $0x2e8] sm:$0xff] 0.0
  %114 = vst [vmem:[#allocation2 + $0x2f0] sm:$0xff] 0.0
  %115 = vst [vmem:[#allocation2 + $0x2f8] sm:$0x3] 0.0
  %116 = vst [vmem:[#allocation2 + $0x300] sm:$0xff] 0.0
  %117 = vst [vmem:[#allocation2 + $0x308] sm:$0xff] 0.0
  %118 = vst [vmem:[#allocation2 + $0x310] sm:$0x3] 0.0
  %119 = vst [vmem:[#allocation2 + $0x318] sm:$0xff] 0.0
  %120 = vst [vmem:[#allocation2 + $0x320] sm:$0xff] 0.0
  %121 = vst [vmem:[#allocation2 + $0x328] sm:$0x3] 0.0
  %122 = vst [vmem:[#allocation2 + $0x330] sm:$0xff] 0.0
  %123 = vst [vmem:[#allocation2 + $0x338] sm:$0xff] 0.0
  %124 = vst [vmem:[#allocation2 + $0x340] sm:$0x3] 0.0
  %125 = vst [vmem:[#allocation2 + $0x348] sm:$0xff] 0.0
  %126 = vst [vmem:[#allocation2 + $0x350] sm:$0xff] 0.0
  %127 = vst [vmem:[#allocation2 + $0x358] sm:$0x3] 0.0
  %v128 = vld [vmem:[%s0] sm:$0xff]
  %v129 = vld [vmem:[%s0 + $0x8] sm:$0xff]
  %v130 = vld [vmem:[%s0 + $0x10] sm:$0xff]
  %v131 = vld [vmem:[%s0 + $0x18] sm:$0xff]
  %v132 = vld [vmem:[%s0 + $0x20] sm:$0xff]
  %v133 = vld [vmem:[%s0 + $0x28] sm:$0xff]
  %v134 = vld [vmem:[%s0 + $0x30] sm:$0xff]
  %v135 = vld [vmem:[%s0 + $0x38] sm:$0xff]
  %v136 = vld [vmem:[%s0 + $0x40] sm:$0xff]
  %v137 = vld [vmem:[%s0 + $0x48] sm:$0xff]
  %v138 = vld [vmem:[%s0 + $0x50] sm:$0xff]
  %v139 = vld [vmem:[%s0 + $0x58] sm:$0xff]
  %v140 = vld [vmem:[%s0 + $0x60] sm:$0xff]
  %v141 = vld [vmem:[%s0 + $0x68] sm:$0xff]
  %v142 = vld [vmem:[%s0 + $0x70] sm:$0xff]
  %v143 = vld [vmem:[%s0 + $0x78] sm:$0xff]
  %v144 = vld [vmem:[%s0 + $0x80] sm:$0xff]
  %v145 = vld [vmem:[%s0 + $0x88] sm:$0xff]
  %v146 = vld [vmem:[%s0 + $0x90] sm:$0xff]
  %v147 = vld [vmem:[%s0 + $0x98] sm:$0xff]
  %v148 = vld [vmem:[%s0 + $0xa0] sm:$0xff]
  %v149 = vld [vmem:[%s0 + $0xa8] sm:$0xff]
  %v150 = vld [vmem:[%s0 + $0xb0] sm:$0xff]
  %v151 = vld [vmem:[%s0 + $0xb8] sm:$0xff]
  %v152 = vld [vmem:[%s0 + $0xc0] sm:$0xff]
  %v153 = vld [vmem:[%s0 + $0xc8] sm:$0xff]
  %v154 = vld [vmem:[%s0 + $0xd0] sm:$0xff]
  %v155 = vld [vmem:[%s0 + $0xd8] sm:$0xff]
  %v156 = vld [vmem:[%s0 + $0xe0] sm:$0xff]
  %v157 = vld [vmem:[%s0 + $0xe8] sm:$0xff]
  %v158 = vld [vmem:[%s0 + $0xf0] sm:$0xff]
  %v159 = vld [vmem:[%s0 + $0xf8] sm:$0xff]
  %v160 = vld [vmem:[%s0 + $0x100] sm:$0xff]
  %v161 = vld [vmem:[%s0 + $0x108] sm:$0xff]
  %v162 = vld [vmem:[%s0 + $0x110] sm:$0xff]
  %v163 = vld [vmem:[%s0 + $0x118] sm:$0xff]
  %v164 = vld [vmem:[%s0 + $0x120] sm:$0xff]
  %v165 = vld [vmem:[%s0 + $0x128] sm:$0xff]
  %v166 = vld [vmem:[%s0 + $0x130] sm:$0xff]
  %v167 = vld [vmem:[%s0 + $0x138] sm:$0xff]
  %v168 = vld [vmem:[%s0 + $0x140] sm:$0xff]
  %v169 = vld [vmem:[%s0 + $0x148] sm:$0xff]
  %v170 = vld [vmem:[%s0 + $0x150] sm:$0xff]
  %v171 = vld [vmem:[%s0 + $0x158] sm:$0xff]
  %v172 = vld [vmem:[%s0 + $0x160] sm:$0xff]
  %v173 = vld [vmem:[%s0 + $0x168] sm:$0xff]
  %v174 = vld [vmem:[%s0 + $0x170] sm:$0xff]
  %v175 = vld [vmem:[%s0 + $0x178] sm:$0xff]
  %v176 = vld [vmem:[%s0 + $0x180] sm:$0xff]
  %v177 = vld [vmem:[%s0 + $0x188] sm:$0xff]
  %v178 = vld [vmem:[%s0 + $0x190] sm:$0xff]
  %v179 = vld [vmem:[%s0 + $0x198] sm:$0xff]
  %v180 = vld [vmem:[%s0 + $0x1a0] sm:$0xff]
  %v181 = vld [vmem:[%s0 + $0x1a8] sm:$0xff]
  %v182 = vld [vmem:[%s0 + $0x1b0] sm:$0xff]
  %v183 = vld [vmem:[%s0 + $0x1b8] sm:$0xff]
  %v184 = vld [vmem:[%s0 + $0x1c0] sm:$0xff]
  %v185 = vld [vmem:[%s0 + $0x1c8] sm:$0xff]
  %v186 = vld [vmem:[%s0 + $0x1d0] sm:$0xff]
  %v187 = vld [vmem:[%s0 + $0x1d8] sm:$0xff]
  %v188 = vld [vmem:[%s0 + $0x1e0] sm:$0xff]
  %v189 = vld [vmem:[%s0 + $0x1e8] sm:$0xff]
  %v190 = vld [vmem:[%s0 + $0x1f0] sm:$0xff]
  %v191 = vld [vmem:[%s0 + $0x1f8] sm:$0xff]
  %s192 = scalar_lea.vmem [#allocation2], 24
  %193 = vst [vmem:[%s192 + $0x1] sm:$0xff] %v128
  %194 = vst [vmem:[%s192 + $0x9] sm:$0xff] %v129
  %195 = vst [vmem:[%s192 + $0x19] sm:$0xff] %v130
  %196 = vst [vmem:[%s192 + $0x21] sm:$0xff] %v131
  %197 = vst [vmem:[%s192 + $0x31] sm:$0xff] %v132
  %198 = vst [vmem:[%s192 + $0x39] sm:$0xff] %v133
  %199 = vst [vmem:[%s192 + $0x49] sm:$0xff] %v134
  %200 = vst [vmem:[%s192 + $0x51] sm:$0xff] %v135
  %201 = vst [vmem:[%s192 + $0x61] sm:$0xff] %v136
  %202 = vst [vmem:[%s192 + $0x69] sm:$0xff] %v137
  %203 = vst [vmem:[%s192 + $0x79] sm:$0xff] %v138
  %204 = vst [vmem:[%s192 + $0x81] sm:$0xff] %v139
  %205 = vst [vmem:[%s192 + $0x91] sm:$0xff] %v140
  %206 = vst [vmem:[%s192 + $0x99] sm:$0xff] %v141
  %207 = vst [vmem:[%s192 + $0xa9] sm:$0xff] %v142
  %208 = vst [vmem:[%s192 + $0xb1] sm:$0xff] %v143
  %209 = vst [vmem:[%s192 + $0xc1] sm:$0xff] %v144
  %210 = vst [vmem:[%s192 + $0xc9] sm:$0xff] %v145
  %211 = vst [vmem:[%s192 + $0xd9] sm:$0xff] %v146
  %212 = vst [vmem:[%s192 + $0xe1] sm:$0xff] %v147
  %213 = vst [vmem:[%s192 + $0xf1] sm:$0xff] %v148
  %214 = vst [vmem:[%s192 + $0xf9] sm:$0xff] %v149
  %215 = vst [vmem:[%s192 + $0x109] sm:$0xff] %v150
  %216 = vst [vmem:[%s192 + $0x111] sm:$0xff] %v151
  %217 = vst [vmem:[%s192 + $0x121] sm:$0xff] %v152
  %218 = vst [vmem:[%s192 + $0x129] sm:$0xff] %v153
  %219 = vst [vmem:[%s192 + $0x139] sm:$0xff] %v154
  %220 = vst [vmem:[%s192 + $0x141] sm:$0xff] %v155
  %221 = vst [vmem:[%s192 + $0x151] sm:$0xff] %v156
  %222 = vst [vmem:[%s192 + $0x159] sm:$0xff] %v157
  %223 = vst [vmem:[%s192 + $0x169] sm:$0xff] %v158
  %224 = vst [vmem:[%s192 + $0x171] sm:$0xff] %v159
  %225 = vst [vmem:[%s192 + $0x1b1] sm:$0xff] %v160
  %226 = vst [vmem:[%s192 + $0x1b9] sm:$0xff] %v161
  %227 = vst [vmem:[%s192 + $0x1c9] sm:$0xff] %v162
  %228 = vst [vmem:[%s192 + $0x1d1] sm:$0xff] %v163
  %229 = vst [vmem:[%s192 + $0x1e1] sm:$0xff] %v164
  %230 = vst [vmem:[%s192 + $0x1e9] sm:$0xff] %v165
  %231 = vst [vmem:[%s192 + $0x1f9] sm:$0xff] %v166
  %232 = vst [vmem:[%s192 + $0x201] sm:$0xff] %v167
  %233 = vst [vmem:[%s192 + $0x211] sm:$0xff] %v168
  %234 = vst [vmem:[%s192 + $0x219] sm:$0xff] %v169
  %235 = vst [vmem:[%s192 + $0x229] sm:$0xff] %v170
  %236 = vst [vmem:[%s192 + $0x231] sm:$0xff] %v171
  %237 = vst [vmem:[%s192 + $0x241] sm:$0xff] %v172
  %238 = vst [vmem:[%s192 + $0x249] sm:$0xff] %v173
  %239 = vst [vmem:[%s192 + $0x259] sm:$0xff] %v174
  %240 = vst [vmem:[%s192 + $0x261] sm:$0xff] %v175
  %241 = vst [vmem:[%s192 + $0x271] sm:$0xff] %v176
  %242 = vst [vmem:[%s192 + $0x279] sm:$0xff] %v177
  %243 = vst [vmem:[%s192 + $0x289] sm:$0xff] %v178
  %244 = vst [vmem:[%s192 + $0x291] sm:$0xff] %v179
  %245 = vst [vmem:[%s192 + $0x2a1] sm:$0xff] %v180
  %246 = vst [vmem:[%s192 + $0x2a9] sm:$0xff] %v181
  %247 = vst [vmem:[%s192 + $0x2b9] sm:$0xff] %v182
  %248 = vst [vmem:[%s192 + $0x2c1] sm:$0xff] %v183
  %249 = vst [vmem:[%s192 + $0x2d1] sm:$0xff] %v184
  %250 = vst [vmem:[%s192 + $0x2d9] sm:$0xff] %v185
  %251 = vst [vmem:[%s192 + $0x2e9] sm:$0xff] %v186
  %252 = vst [vmem:[%s192 + $0x2f1] sm:$0xff] %v187
  %253 = vst [vmem:[%s192 + $0x301] sm:$0xff] %v188
  %254 = vst [vmem:[%s192 + $0x309] sm:$0xff] %v189
  %255 = vst [vmem:[%s192 + $0x319] sm:$0xff] %v190
  %256 = vst [vmem:[%s192 + $0x321] sm:$0xff] %v191
  %v257 = vld [vmem:[#allocation2] sm:$0xff]
  %v258 = vld [vmem:[#allocation2 + $0x8] sm:$0xff]
  %v259 = vld [vmem:[#allocation2 + $0x18] sm:$0xff]
  %v260 = vld [vmem:[#allocation2 + $0x20] sm:$0xff]
  %v261 = vld [vmem:[#allocation2 + $0x30] sm:$0xff]
  %v262 = vld [vmem:[#allocation2 + $0x38] sm:$0xff]
  %v263 = vld [vmem:[#allocation2 + $0x48] sm:$0xff]
  %v264 = vld [vmem:[#allocation2 + $0x50] sm:$0xff]
  %v265 = vld [vmem:[#allocation2 + $0x60] sm:$0xff]
  %v266 = vld [vmem:[#allocation2 + $0x68] sm:$0xff]
  %v267 = vld [vmem:[#allocation2 + $0x78] sm:$0xff]
  %v268 = vld [vmem:[#allocation2 + $0x80] sm:$0xff]
  %v269 = vld [vmem:[#allocation2 + $0x90] sm:$0xff]
  %v270 = vld [vmem:[#allocation2 + $0x98] sm:$0xff]
  %v271 = vld [vmem:[#allocation2 + $0xa8] sm:$0xff]
  %v272 = vld [vmem:[#allocation2 + $0xb0] sm:$0xff]
  %v273 = vld [vmem:[#allocation2 + $0xc0] sm:$0xff]
  %v274 = vld [vmem:[#allocation2 + $0xc8] sm:$0xff]
  %v275 = vld [vmem:[#allocation2 + $0xd8] sm:$0xff]
  %v276 = vld [vmem:[#allocation2 + $0xe0] sm:$0xff]
  %v277 = vld [vmem:[#allocation2 + $0xf0] sm:$0xff]
  %v278 = vld [vmem:[#allocation2 + $0xf8] sm:$0xff]
  %v279 = vld [vmem:[#allocation2 + $0x108] sm:$0xff]
  %v280 = vld [vmem:[#allocation2 + $0x110] sm:$0xff]
  %v281 = vld [vmem:[#allocation2 + $0x120] sm:$0xff]
  %v282 = vld [vmem:[#allocation2 + $0x128] sm:$0xff]
  %v283 = vld [vmem:[#allocation2 + $0x138] sm:$0xff]
  %v284 = vld [vmem:[#allocation2 + $0x140] sm:$0xff]
  %v285 = vld [vmem:[#allocation2 + $0x150] sm:$0xff]
  %v286 = vld [vmem:[#allocation2 + $0x158] sm:$0xff]
  %v287 = vld [vmem:[#allocation2 + $0x168] sm:$0xff]
  %v288 = vld [vmem:[#allocation2 + $0x170] sm:$0xff]
  %v289 = vld [vmem:[#allocation2 + $0x1b0] sm:$0xff]
  %v290 = vld [vmem:[#allocation2 + $0x1b8] sm:$0xff]
  %v291 = vld [vmem:[#allocation2 + $0x1c8] sm:$0xff]
  %v292 = vld [vmem:[#allocation2 + $0x1d0] sm:$0xff]
  %v293 = vld [vmem:[#allocation2 + $0x1e0] sm:$0xff]
  %v294 = vld [vmem:[#allocation2 + $0x1e8] sm:$0xff]
  %v295 = vld [vmem:[#allocation2 + $0x1f8] sm:$0xff]
  %v296 = vld [vmem:[#allocation2 + $0x200] sm:$0xff]
  %v297 = vld [vmem:[#allocation2 + $0x210] sm:$0xff]
  %v298 = vld [vmem:[#allocation2 + $0x218] sm:$0xff]
  %v299 = vld [vmem:[#allocation2 + $0x228] sm:$0xff]
  %v300 = vld [vmem:[#allocation2 + $0x230] sm:$0xff]
  %v301 = vld [vmem:[#allocation2 + $0x240] sm:$0xff]
  %v302 = vld [vmem:[#allocation2 + $0x248] sm:$0xff]
  %v303 = vld [vmem:[#allocation2 + $0x258] sm:$0xff]
  %v304 = vld [vmem:[#allocation2 + $0x260] sm:$0xff]
  %v305 = vld [vmem:[#allocation2 + $0x270] sm:$0xff]
  %v306 = vld [vmem:[#allocation2 + $0x278] sm:$0xff]
  %v307 = vld [vmem:[#allocation2 + $0x288] sm:$0xff]
  %v308 = vld [vmem:[#allocation2 + $0x290] sm:$0xff]
  %v309 = vld [vmem:[#allocation2 + $0x2a0] sm:$0xff]
  %v310 = vld [vmem:[#allocation2 + $0x2a8] sm:$0xff]
  %v311 = vld [vmem:[#allocation2 + $0x2b8] sm:$0xff]
  %v312 = vld [vmem:[#allocation2 + $0x2c0] sm:$0xff]
  %v313 = vld [vmem:[#allocation2 + $0x2d0] sm:$0xff]
  %v314 = vld [vmem:[#allocation2 + $0x2d8] sm:$0xff]
  %v315 = vld [vmem:[#allocation2 + $0x2e8] sm:$0xff]
  %v316 = vld [vmem:[#allocation2 + $0x2f0] sm:$0xff]
  %v317 = vld [vmem:[#allocation2 + $0x300] sm:$0xff]
  %v318 = vld [vmem:[#allocation2 + $0x308] sm:$0xff]
  %v319 = vld [vmem:[#allocation2 + $0x318] sm:$0xff]
  %v320 = vld [vmem:[#allocation2 + $0x320] sm:$0xff]
  %v321 = vld [vmem:[%s1] sm:$0x1]
  %v322 = vperm.slane %v321, 0
  %v323 = vmul.f32 %v257, %v322
  %v324 = vmul.f32 %v258, %v322
  %v325 = vmul.f32 %v259, %v322
  %v326 = vmul.f32 %v260, %v322
  %v327 = vmul.f32 %v261, %v322
  %v328 = vmul.f32 %v262, %v322
  %v329 = vmul.f32 %v263, %v322
  %v330 = vmul.f32 %v264, %v322
  %v331 = vmul.f32 %v265, %v322
  %v332 = vmul.f32 %v266, %v322
  %v333 = vmul.f32 %v267, %v322
  %v334 = vmul.f32 %v268, %v322
  %v335 = vmul.f32 %v269, %v322
  %v336 = vmul.f32 %v270, %v322
  %v337 = vmul.f32 %v271, %v322
  %v338 = vmul.f32 %v272, %v322
  %v339 = vmul.f32 %v273, %v322
  %v340 = vmul.f32 %v274, %v322
  %v341 = vmul.f32 %v275, %v322
  %v342 = vmul.f32 %v276, %v322
  %v343 = vmul.f32 %v277, %v322
  %v344 = vmul.f32 %v278, %v322
  %v345 = vmul.f32 %v279, %v322
  %v346 = vmul.f32 %v280, %v322
  %v347 = vmul.f32 %v281, %v322
  %v348 = vmul.f32 %v282, %v322
  %v349 = vmul.f32 %v283, %v322
  %v350 = vmul.f32 %v284, %v322
  %v351 = vmul.f32 %v285, %v322
  %v352 = vmul.f32 %v286, %v322
  %v353 = vmul.f32 %v287, %v322
  %v354 = vmul.f32 %v288, %v322
  %v355 = vmul.f32 %v289, %v322
  %v356 = vmul.f32 %v290, %v322
  %v357 = vmul.f32 %v291, %v322
  %v358 = vmul.f32 %v292, %v322
  %v359 = vmul.f32 %v293, %v322
  %v360 = vmul.f32 %v294, %v322
  %v361 = vmul.f32 %v295, %v322
  %v362 = vmul.f32 %v296, %v322
  %v363 = vmul.f32 %v297, %v322
  %v364 = vmul.f32 %v298, %v322
  %v365 = vmul.f32 %v299, %v322
  %v366 = vmul.f32 %v300, %v322
  %v367 = vmul.f32 %v301, %v322
  %v368 = vmul.f32 %v302, %v322
  %v369 = vmul.f32 %v303, %v322
  %v370 = vmul.f32 %v304, %v322
  %v371 = vmul.f32 %v305, %v322
  %v372 = vmul.f32 %v306, %v322
  %v373 = vmul.f32 %v307, %v322
  %v374 = vmul.f32 %v308, %v322
  %v375 = vmul.f32 %v309, %v322
  %v376 = vmul.f32 %v310, %v322
  %v377 = vmul.f32 %v311, %v322
  %v378 = vmul.f32 %v312, %v322
  %v379 = vmul.f32 %v313, %v322
  %v380 = vmul.f32 %v314, %v322
  %v381 = vmul.f32 %v315, %v322
  %v382 = vmul.f32 %v316, %v322
  %v383 = vmul.f32 %v317, %v322
  %v384 = vmul.f32 %v318, %v322
  %v385 = vmul.f32 %v319, %v322
  %v386 = vmul.f32 %v320, %v322
  %v387 = vld [vmem:[#allocation2 + $0x1] sm:$0xff]
  %v388 = vld [vmem:[#allocation2 + $0x9] sm:$0xff]
  %v389 = vld [vmem:[#allocation2 + $0x19] sm:$0xff]
  %v390 = vld [vmem:[#allocation2 + $0x21] sm:$0xff]
  %v391 = vld [vmem:[#allocation2 + $0x31] sm:$0xff]
  %v392 = vld [vmem:[#allocation2 + $0x39] sm:$0xff]
  %v393 = vld [vmem:[#allocation2 + $0x49] sm:$0xff]
  %v394 = vld [vmem:[#allocation2 + $0x51] sm:$0xff]
  %v395 = vld [vmem:[#allocation2 + $0x61] sm:$0xff]
  %v396 = vld [vmem:[#allocation2 + $0x69] sm:$0xff]
  %v397 = vld [vmem:[#allocation2 + $0x79] sm:$0xff]
  %v398 = vld [vmem:[#allocation2 + $0x81] sm:$0xff]
  %v399 = vld [vmem:[#allocation2 + $0x91] sm:$0xff]
  %v400 = vld [vmem:[#allocation2 + $0x99] sm:$0xff]
  %v401 = vld [vmem:[#allocation2 + $0xa9] sm:$0xff]
  %v402 = vld [vmem:[#allocation2 + $0xb1] sm:$0xff]
  %v403 = vld [vmem:[#allocation2 + $0xc1] sm:$0xff]
  %v404 = vld [vmem:[#allocation2 + $0xc9] sm:$0xff]
  %v405 = vld [vmem:[#allocation2 + $0xd9] sm:$0xff]
  %v406 = vld [vmem:[#allocation2 + $0xe1] sm:$0xff]
  %v407 = vld [vmem:[#allocation2 + $0xf1] sm:$0xff]
  %v408 = vld [vmem:[#allocation2 + $0xf9] sm:$0xff]
  %v409 = vld [vmem:[#allocation2 + $0x109] sm:$0xff]
  %v410 = vld [vmem:[#allocation2 + $0x111] sm:$0xff]
  %v411 = vld [vmem:[#allocation2 + $0x121] sm:$0xff]
  %v412 = vld [vmem:[#allocation2 + $0x129] sm:$0xff]
  %v413 = vld [vmem:[#allocation2 + $0x139] sm:$0xff]
  %v414 = vld [vmem:[#allocation2 + $0x141] sm:$0xff]
  %v415 = vld [vmem:[#allocation2 + $0x151] sm:$0xff]
  %v416 = vld [vmem:[#allocation2 + $0x159] sm:$0xff]
  %v417 = vld [vmem:[#allocation2 + $0x169] sm:$0xff]
  %v418 = vld [vmem:[#allocation2 + $0x171] sm:$0xff]
  %v419 = vld [vmem:[#allocation2 + $0x1b1] sm:$0xff]
  %v420 = vld [vmem:[#allocation2 + $0x1b9] sm:$0xff]
  %v421 = vld [vmem:[#allocation2 + $0x1c9] sm:$0xff]
  %v422 = vld [vmem:[#allocation2 + $0x1d1] sm:$0xff]
  %v423 = vld [vmem:[#allocation2 + $0x1e1] sm:$0xff]
  %v424 = vld [vmem:[#allocation2 + $0x1e9] sm:$0xff]
  %v425 = vld [vmem:[#allocation2 + $0x1f9] sm:$0xff]
  %v426 = vld [vmem:[#allocation2 + $0x201] sm:$0xff]
  %v427 = vld [vmem:[#allocation2 + $0x211] sm:$0xff]
  %v428 = vld [vmem:[#allocation2 + $0x219] sm:$0xff]
  %v429 = vld [vmem:[#allocation2 + $0x229] sm:$0xff]
  %v430 = vld [vmem:[#allocation2 + $0x231] sm:$0xff]
  %v431 = vld [vmem:[#allocation2 + $0x241] sm:$0xff]
  %v432 = vld [vmem:[#allocation2 + $0x249] sm:$0xff]
  %v433 = vld [vmem:[#allocation2 + $0x259] sm:$0xff]
  %v434 = vld [vmem:[#allocation2 + $0x261] sm:$0xff]
  %v435 = vld [vmem:[#allocation2 + $0x271] sm:$0xff]
  %v436 = vld [vmem:[#allocation2 + $0x279] sm:$0xff]
  %v437 = vld [vmem:[#allocation2 + $0x289] sm:$0xff]
  %v438 = vld [vmem:[#allocation2 + $0x291] sm:$0xff]
  %v439 = vld [vmem:[#allocation2 + $0x2a1] sm:$0xff]
  %v440 = vld [vmem:[#allocation2 + $0x2a9] sm:$0xff]
  %v441 = vld [vmem:[#allocation2 + $0x2b9] sm:$0xff]
  %v442 = vld [vmem:[#allocation2 + $0x2c1] sm:$0xff]
  %v443 = vld [vmem:[#allocation2 + $0x2d1] sm:$0xff]
  %v444 = vld [vmem:[#allocation2 + $0x2d9] sm:$0xff]
  %v445 = vld [vmem:[#allocation2 + $0x2e9] sm:$0xff]
  %v446 = vld [vmem:[#allocation2 + $0x2f1] sm:$0xff]
  %v447 = vld [vmem:[#allocation2 + $0x301] sm:$0xff]
  %v448 = vld [vmem:[#allocation2 + $0x309] sm:$0xff]
  %v449 = vld [vmem:[#allocation2 + $0x319] sm:$0xff]
  %v450 = vld [vmem:[#allocation2 + $0x321] sm:$0xff]
  %v451 = vld [vmem:[%s1 + $0x1] sm:$0x1]
  %v452 = vperm.slane %v451, 0
  %v453 = vmul.f32 %v387, %v452
  %v454 = vmul.f32 %v388, %v452
  %v455 = vmul.f32 %v389, %v452
  %v456 = vmul.f32 %v390, %v452
  %v457 = vmul.f32 %v391, %v452
  %v458 = vmul.f32 %v392, %v452
  %v459 = vmul.f32 %v393, %v452
  %v460 = vmul.f32 %v394, %v452
  %v461 = vmul.f32 %v395, %v452
  %v462 = vmul.f32 %v396, %v452
  %v463 = vmul.f32 %v397, %v452
  %v464 = vmul.f32 %v398, %v452
  %v465 = vmul.f32 %v399, %v452
  %v466 = vmul.f32 %v400, %v452
  %v467 = vmul.f32 %v401, %v452
  %v468 = vmul.f32 %v402, %v452
  %v469 = vmul.f32 %v403, %v452
  %v470 = vmul.f32 %v404, %v452
  %v471 = vmul.f32 %v405, %v452
  %v472 = vmul.f32 %v406, %v452
  %v473 = vmul.f32 %v407, %v452
  %v474 = vmul.f32 %v408, %v452
  %v475 = vmul.f32 %v409, %v452
  %v476 = vmul.f32 %v410, %v452
  %v477 = vmul.f32 %v411, %v452
  %v478 = vmul.f32 %v412, %v452
  %v479 = vmul.f32 %v413, %v452
  %v480 = vmul.f32 %v414, %v452
  %v481 = vmul.f32 %v415, %v452
  %v482 = vmul.f32 %v416, %v452
  %v483 = vmul.f32 %v417, %v452
  %v484 = vmul.f32 %v418, %v452
  %v485 = vmul.f32 %v419, %v452
  %v486 = vmul.f32 %v420, %v452
  %v487 = vmul.f32 %v421, %v452
  %v488 = vmul.f32 %v422, %v452
  %v489 = vmul.f32 %v423, %v452
  %v490 = vmul.f32 %v424, %v452
  %v491 = vmul.f32 %v425, %v452
  %v492 = vmul.f32 %v426, %v452
  %v493 = vmul.f32 %v427, %v452
  %v494 = vmul.f32 %v428, %v452
  %v495 = vmul.f32 %v429, %v452
  %v496 = vmul.f32 %v430, %v452
  %v497 = vmul.f32 %v431, %v452
  %v498 = vmul.f32 %v432, %v452
  %v499 = vmul.f32 %v433, %v452
  %v500 = vmul.f32 %v434, %v452
  %v501 = vmul.f32 %v435, %v452
  %v502 = vmul.f32 %v436, %v452
  %v503 = vmul.f32 %v437, %v452
  %v504 = vmul.f32 %v438, %v452
  %v505 = vmul.f32 %v439, %v452
  %v506 = vmul.f32 %v440, %v452
  %v507 = vmul.f32 %v441, %v452
  %v508 = vmul.f32 %v442, %v452
  %v509 = vmul.f32 %v443, %v452
  %v510 = vmul.f32 %v444, %v452
  %v511 = vmul.f32 %v445, %v452
  %v512 = vmul.f32 %v446, %v452
  %v513 = vmul.f32 %v447, %v452
  %v514 = vmul.f32 %v448, %v452
  %v515 = vmul.f32 %v449, %v452
  %v516 = vmul.f32 %v450, %v452
  %v517 = vadd.f32 %v323, %v453
  %v518 = vadd.f32 %v324, %v454
  %v519 = vadd.f32 %v325, %v455
  %v520 = vadd.f32 %v326, %v456
  %v521 = vadd.f32 %v327, %v457
  %v522 = vadd.f32 %v328, %v458
  %v523 = vadd.f32 %v329, %v459
  %v524 = vadd.f32 %v330, %v460
  %v525 = vadd.f32 %v331, %v461
  %v526 = vadd.f32 %v332, %v462
  %v527 = vadd.f32 %v333, %v463
  %v528 = vadd.f32 %v334, %v464
  %v529 = vadd.f32 %v335, %v465
  %v530 = vadd.f32 %v336, %v466
  %v531 = vadd.f32 %v337, %v467
  %v532 = vadd.f32 %v338, %v468
  %v533 = vadd.f32 %v339, %v469
  %v534 = vadd.f32 %v340, %v470
  %v535 = vadd.f32 %v341, %v471
  %v536 = vadd.f32 %v342, %v472
  %v537 = vadd.f32 %v343, %v473
  %v538 = vadd.f32 %v344, %v474
  %v539 = vadd.f32 %v345, %v475
  %v540 = vadd.f32 %v346, %v476
  %v541 = vadd.f32 %v347, %v477
  %v542 = vadd.f32 %v348, %v478
  %v543 = vadd.f32 %v349, %v479
  %v544 = vadd.f32 %v350, %v480
  %v545 = vadd.f32 %v351, %v481
  %v546 = vadd.f32 %v352, %v482
  %v547 = vadd.f32 %v353, %v483
  %v548 = vadd.f32 %v354, %v484
  %v549 = vadd.f32 %v355, %v485
  %v550 = vadd.f32 %v356, %v486
  %v551 = vadd.f32 %v357, %v487
  %v552 = vadd.f32 %v358, %v488
  %v553 = vadd.f32 %v359, %v489
  %v554 = vadd.f32 %v360, %v490
  %v555 = vadd.f32 %v361, %v491
  %v556 = vadd.f32 %v362, %v492
  %v557 = vadd.f32 %v363, %v493
  %v558 = vadd.f32 %v364, %v494
  %v559 = vadd.f32 %v365, %v495
  %v560 = vadd.f32 %v366, %v496
  %v561 = vadd.f32 %v367, %v497
  %v562 = vadd.f32 %v368, %v498
  %v563 = vadd.f32 %v369, %v499
  %v564 = vadd.f32 %v370, %v500
  %v565 = vadd.f32 %v371, %v501
  %v566 = vadd.f32 %v372, %v502
  %v567 = vadd.f32 %v373, %v503
  %v568 = vadd.f32 %v374, %v504
  %v569 = vadd.f32 %v375, %v505
  %v570 = vadd.f32 %v376, %v506
  %v571 = vadd.f32 %v377, %v507
  %v572 = vadd.f32 %v378, %v508
  %v573 = vadd.f32 %v379, %v509
  %v574 = vadd.f32 %v380, %v510
  %v575 = vadd.f32 %v381, %v511
  %v576 = vadd.f32 %v382, %v512
  %v577 = vadd.f32 %v383, %v513
  %v578 = vadd.f32 %v384, %v514
  %v579 = vadd.f32 %v385, %v515
  %v580 = vadd.f32 %v386, %v516
  %v581 = vld [vmem:[#allocation2 + $0x2] sm:$0xff]
  %v582 = vld [vmem:[#allocation2 + $0xa] sm:$0xff]
  %v583 = vld [vmem:[#allocation2 + $0x1a] sm:$0xff]
  %v584 = vld [vmem:[#allocation2 + $0x22] sm:$0xff]
  %v585 = vld [vmem:[#allocation2 + $0x32] sm:$0xff]
  %v586 = vld [vmem:[#allocation2 + $0x3a] sm:$0xff]
  %v587 = vld [vmem:[#allocation2 + $0x4a] sm:$0xff]
  %v588 = vld [vmem:[#allocation2 + $0x52] sm:$0xff]
  %v589 = vld [vmem:[#allocation2 + $0x62] sm:$0xff]
  %v590 = vld [vmem:[#allocation2 + $0x6a] sm:$0xff]
  %v591 = vld [vmem:[#allocation2 + $0x7a] sm:$0xff]
  %v592 = vld [vmem:[#allocation2 + $0x82] sm:$0xff]
  %v593 = vld [vmem:[#allocation2 + $0x92] sm:$0xff]
  %v594 = vld [vmem:[#allocation2 + $0x9a] sm:$0xff]
  %v595 = vld [vmem:[#allocation2 + $0xaa] sm:$0xff]
  %v596 = vld [vmem:[#allocation2 + $0xb2] sm:$0xff]
  %v597 = vld [vmem:[#allocation2 + $0xc2] sm:$0xff]
  %v598 = vld [vmem:[#allocation2 + $0xca] sm:$0xff]
  %v599 = vld [vmem:[#allocation2 + $0xda] sm:$0xff]
  %v600 = vld [vmem:[#allocation2 + $0xe2] sm:$0xff]
  %v601 = vld [vmem:[#allocation2 + $0xf2] sm:$0xff]
  %v602 = vld [vmem:[#allocation2 + $0xfa] sm:$0xff]
  %v603 = vld [vmem:[#allocation2 + $0x10a] sm:$0xff]
  %v604 = vld [vmem:[#allocation2 + $0x112] sm:$0xff]
  %v605 = vld [vmem:[#allocation2 + $0x122] sm:$0xff]
  %v606 = vld [vmem:[#allocation2 + $0x12a] sm:$0xff]
  %v607 = vld [vmem:[#allocation2 + $0x13a] sm:$0xff]
  %v608 = vld [vmem:[#allocation2 + $0x142] sm:$0xff]
  %v609 = vld [vmem:[#allocation2 + $0x152] sm:$0xff]
  %v610 = vld [vmem:[#allocation2 + $0x15a] sm:$0xff]
  %v611 = vld [vmem:[#allocation2 + $0x16a] sm:$0xff]
  %v612 = vld [vmem:[#allocation2 + $0x172] sm:$0xff]
  %v613 = vld [vmem:[#allocation2 + $0x1b2] sm:$0xff]
  %v614 = vld [vmem:[#allocation2 + $0x1ba] sm:$0xff]
  %v615 = vld [vmem:[#allocation2 + $0x1ca] sm:$0xff]
  %v616 = vld [vmem:[#allocation2 + $0x1d2] sm:$0xff]
  %v617 = vld [vmem:[#allocation2 + $0x1e2] sm:$0xff]
  %v618 = vld [vmem:[#allocation2 + $0x1ea] sm:$0xff]
  %v619 = vld [vmem:[#allocation2 + $0x1fa] sm:$0xff]
  %v620 = vld [vmem:[#allocation2 + $0x202] sm:$0xff]
  %v621 = vld [vmem:[#allocation2 + $0x212] sm:$0xff]
  %v622 = vld [vmem:[#allocation2 + $0x21a] sm:$0xff]
  %v623 = vld [vmem:[#allocation2 + $0x22a] sm:$0xff]
  %v624 = vld [vmem:[#allocation2 + $0x232] sm:$0xff]
  %v625 = vld [vmem:[#allocation2 + $0x242] sm:$0xff]
  %v626 = vld [vmem:[#allocation2 + $0x24a] sm:$0xff]
  %v627 = vld [vmem:[#allocation2 + $0x25a] sm:$0xff]
  %v628 = vld [vmem:[#allocation2 + $0x262] sm:$0xff]
  %v629 = vld [vmem:[#allocation2 + $0x272] sm:$0xff]
  %v630 = vld [vmem:[#allocation2 + $0x27a] sm:$0xff]
  %v631 = vld [vmem:[#allocation2 + $0x28a] sm:$0xff]
  %v632 = vld [vmem:[#allocation2 + $0x292] sm:$0xff]
  %v633 = vld [vmem:[#allocation2 + $0x2a2] sm:$0xff]
  %v634 = vld [vmem:[#allocation2 + $0x2aa] sm:$0xff]
  %v635 = vld [vmem:[#allocation2 + $0x2ba] sm:$0xff]
  %v636 = vld [vmem:[#allocation2 + $0x2c2] sm:$0xff]
  %v637 = vld [vmem:[#allocation2 + $0x2d2] sm:$0xff]
  %v638 = vld [vmem:[#allocation2 + $0x2da] sm:$0xff]
  %v639 = vld [vmem:[#allocation2 + $0x2ea] sm:$0xff]
  %v640 = vld [vmem:[#allocation2 + $0x2f2] sm:$0xff]
  %v641 = vld [vmem:[#allocation2 + $0x302] sm:$0xff]
  %v642 = vld [vmem:[#allocation2 + $0x30a] sm:$0xff]
  %v643 = vld [vmem:[#allocation2 + $0x31a] sm:$0xff]
  %v644 = vld [vmem:[#allocation2 + $0x322] sm:$0xff]
  %v645 = vld [vmem:[%s1 + $0x2] sm:$0x1]
  %v646 = vperm.slane %v645, 0
  %v647 = vmul.f32 %v581, %v646
  %v648 = vmul.f32 %v582, %v646
  %v649 = vmul.f32 %v583, %v646
  %v650 = vmul.f32 %v584, %v646
  %v651 = vmul.f32 %v585, %v646
  %v652 = vmul.f32 %v586, %v646
  %v653 = vmul.f32 %v587, %v646
  %v654 = vmul.f32 %v588, %v646
  %v655 = vmul.f32 %v589, %v646
  %v656 = vmul.f32 %v590, %v646
  %v657 = vmul.f32 %v591, %v646
  %v658 = vmul.f32 %v592, %v646
  %v659 = vmul.f32 %v593, %v646
  %v660 = vmul.f32 %v594, %v646
  %v661 = vmul.f32 %v595, %v646
  %v662 = vmul.f32 %v596, %v646
  %v663 = vmul.f32 %v597, %v646
  %v664 = vmul.f32 %v598, %v646
  %v665 = vmul.f32 %v599, %v646
  %v666 = vmul.f32 %v600, %v646
  %v667 = vmul.f32 %v601, %v646
  %v668 = vmul.f32 %v602, %v646
  %v669 = vmul.f32 %v603, %v646
  %v670 = vmul.f32 %v604, %v646
  %v671 = vmul.f32 %v605, %v646
  %v672 = vmul.f32 %v606, %v646
  %v673 = vmul.f32 %v607, %v646
  %v674 = vmul.f32 %v608, %v646
  %v675 = vmul.f32 %v609, %v646
  %v676 = vmul.f32 %v610, %v646
  %v677 = vmul.f32 %v611, %v646
  %v678 = vmul.f32 %v612, %v646
  %v679 = vmul.f32 %v613, %v646
  %v680 = vmul.f32 %v614, %v646
  %v681 = vmul.f32 %v615, %v646
  %v682 = vmul.f32 %v616, %v646
  %v683 = vmul.f32 %v617, %v646
  %v684 = vmul.f32 %v618, %v646
  %v685 = vmul.f32 %v619, %v646
  %v686 = vmul.f32 %v620, %v646
  %v687 = vmul.f32 %v621, %v646
  %v688 = vmul.f32 %v622, %v646
  %v689 = vmul.f32 %v623, %v646
  %v690 = vmul.f32 %v624, %v646
  %v691 = vmul.f32 %v625, %v646
  %v692 = vmul.f32 %v626, %v646
  %v693 = vmul.f32 %v627, %v646
  %v694 = vmul.f32 %v628, %v646
  %v695 = vmul.f32 %v629, %v646
  %v696 = vmul.f32 %v630, %v646
  %v697 = vmul.f32 %v631, %v646
  %v698 = vmul.f32 %v632, %v646
  %v699 = vmul.f32 %v633, %v646
  %v700 = vmul.f32 %v634, %v646
  %v701 = vmul.f32 %v635, %v646
  %v702 = vmul.f32 %v636, %v646
  %v703 = vmul.f32 %v637, %v646
  %v704 = vmul.f32 %v638, %v646
  %v705 = vmul.f32 %v639, %v646
  %v706 = vmul.f32 %v640, %v646
  %v707 = vmul.f32 %v641, %v646
  %v708 = vmul.f32 %v642, %v646
  %v709 = vmul.f32 %v643, %v646
  %v710 = vmul.f32 %v644, %v646
  %v711 = vadd.f32 %v517, %v647
  %v712 = vadd.f32 %v518, %v648
  %v713 = vadd.f32 %v519, %v649
  %v714 = vadd.f32 %v520, %v650
  %v715 = vadd.f32 %v521, %v651
  %v716 = vadd.f32 %v522, %v652
  %v717 = vadd.f32 %v523, %v653
  %v718 = vadd.f32 %v524, %v654
  %v719 = vadd.f32 %v525, %v655
  %v720 = vadd.f32 %v526, %v656
  %v721 = vadd.f32 %v527, %v657
  %v722 = vadd.f32 %v528, %v658
  %v723 = vadd.f32 %v529, %v659
  %v724 = vadd.f32 %v530, %v660
  %v725 = vadd.f32 %v531, %v661
  %v726 = vadd.f32 %v532, %v662
  %v727 = vadd.f32 %v533, %v663
  %v728 = vadd.f32 %v534, %v664
  %v729 = vadd.f32 %v535, %v665
  %v730 = vadd.f32 %v536, %v666
  %v731 = vadd.f32 %v537, %v667
  %v732 = vadd.f32 %v538, %v668
  %v733 = vadd.f32 %v539, %v669
  %v734 = vadd.f32 %v540, %v670
  %v735 = vadd.f32 %v541, %v671
  %v736 = vadd.f32 %v542, %v672
  %v737 = vadd.f32 %v543, %v673
  %v738 = vadd.f32 %v544, %v674
  %v739 = vadd.f32 %v545, %v675
  %v740 = vadd.f32 %v546, %v676
  %v741 = vadd.f32 %v547, %v677
  %v742 = vadd.f32 %v548, %v678
  %v743 = vadd.f32 %v549, %v679
  %v744 = vadd.f32 %v550, %v680
  %v745 = vadd.f32 %v551, %v681
  %v746 = vadd.f32 %v552, %v682
  %v747 = vadd.f32 %v553, %v683
  %v748 = vadd.f32 %v554, %v684
  %v749 = vadd.f32 %v555, %v685
  %v750 = vadd.f32 %v556, %v686
  %v751 = vadd.f32 %v557, %v687
  %v752 = vadd.f32 %v558, %v688
  %v753 = vadd.f32 %v559, %v689
  %v754 = vadd.f32 %v560, %v690
  %v755 = vadd.f32 %v561, %v691
  %v756 = vadd.f32 %v562, %v692
  %v757 = vadd.f32 %v563, %v693
  %v758 = vadd.f32 %v564, %v694
  %v759 = vadd.f32 %v565, %v695
  %v760 = vadd.f32 %v566, %v696
  %v761 = vadd.f32 %v567, %v697
  %v762 = vadd.f32 %v568, %v698
  %v763 = vadd.f32 %v569, %v699
  %v764 = vadd.f32 %v570, %v700
  %v765 = vadd.f32 %v571, %v701
  %v766 = vadd.f32 %v572, %v702
  %v767 = vadd.f32 %v573, %v703
  %v768 = vadd.f32 %v574, %v704
  %v769 = vadd.f32 %v575, %v705
  %v770 = vadd.f32 %v576, %v706
  %v771 = vadd.f32 %v577, %v707
  %v772 = vadd.f32 %v578, %v708
  %v773 = vadd.f32 %v579, %v709
  %v774 = vadd.f32 %v580, %v710
  %v775 = vld [vmem:[%s192] sm:$0xff]
  %v776 = vld [vmem:[%s192 + $0x8] sm:$0xff]
  %v777 = vld [vmem:[%s192 + $0x18] sm:$0xff]
  %v778 = vld [vmem:[%s192 + $0x20] sm:$0xff]
  %v779 = vld [vmem:[%s192 + $0x30] sm:$0xff]
  %v780 = vld [vmem:[%s192 + $0x38] sm:$0xff]
  %v781 = vld [vmem:[%s192 + $0x48] sm:$0xff]
  %v782 = vld [vmem:[%s192 + $0x50] sm:$0xff]
  %v783 = vld [vmem:[%s192 + $0x60] sm:$0xff]
  %v784 = vld [vmem:[%s192 + $0x68] sm:$0xff]
  %v785 = vld [vmem:[%s192 + $0x78] sm:$0xff]
  %v786 = vld [vmem:[%s192 + $0x80] sm:$0xff]
  %v787 = vld [vmem:[%s192 + $0x90] sm:$0xff]
  %v788 = vld [vmem:[%s192 + $0x98] sm:$0xff]
  %v789 = vld [vmem:[%s192 + $0xa8] sm:$0xff]
  %v790 = vld [vmem:[%s192 + $0xb0] sm:$0xff]
  %v791 = vld [vmem:[%s192 + $0xc0] sm:$0xff]
  %v792 = vld [vmem:[%s192 + $0xc8] sm:$0xff]
  %v793 = vld [vmem:[%s192 + $0xd8] sm:$0xff]
  %v794 = vld [vmem:[%s192 + $0xe0] sm:$0xff]
  %v795 = vld [vmem:[%s192 + $0xf0] sm:$0xff]
  %v796 = vld [vmem:[%s192 + $0xf8] sm:$0xff]
  %v797 = vld [vmem:[%s192 + $0x108] sm:$0xff]
  %v798 = vld [vmem:[%s192 + $0x110] sm:$0xff]
  %v799 = vld [vmem:[%s192 + $0x120] sm:$0xff]
  %v800 = vld [vmem:[%s192 + $0x128] sm:$0xff]
  %v801 = vld [vmem:[%s192 + $0x138] sm:$0xff]
  %v802 = vld [vmem:[%s192 + $0x140] sm:$0xff]
  %v803 = vld [vmem:[%s192 + $0x150] sm:$0xff]
  %v804 = vld [vmem:[%s192 + $0x158] sm:$0xff]
  %v805 = vld [vmem:[%s192 + $0x168] sm:$0xff]
  %v806 = vld [vmem:[%s192 + $0x170] sm:$0xff]
  %v807 = vld [vmem:[%s192 + $0x1b0] sm:$0xff]
  %v808 = vld [vmem:[%s192 + $0x1b8] sm:$0xff]
  %v809 = vld [vmem:[%s192 + $0x1c8] sm:$0xff]
  %v810 = vld [vmem:[%s192 + $0x1d0] sm:$0xff]
  %v811 = vld [vmem:[%s192 + $0x1e0] sm:$0xff]
  %v812 = vld [vmem:[%s192 + $0x1e8] sm:$0xff]
  %v813 = vld [vmem:[%s192 + $0x1f8] sm:$0xff]
  %v814 = vld [vmem:[%s192 + $0x200] sm:$0xff]
  %v815 = vld [vmem:[%s192 + $0x210] sm:$0xff]
  %v816 = vld [vmem:[%s192 + $0x218] sm:$0xff]
  %v817 = vld [vmem:[%s192 + $0x228] sm:$0xff]
  %v818 = vld [vmem:[%s192 + $0x230] sm:$0xff]
  %v819 = vld [vmem:[%s192 + $0x240] sm:$0xff]
  %v820 = vld [vmem:[%s192 + $0x248] sm:$0xff]
  %v821 = vld [vmem:[%s192 + $0x258] sm:$0xff]
  %v822 = vld [vmem:[%s192 + $0x260] sm:$0xff]
  %v823 = vld [vmem:[%s192 + $0x270] sm:$0xff]
  %v824 = vld [vmem:[%s192 + $0x278] sm:$0xff]
  %v825 = vld [vmem:[%s192 + $0x288] sm:$0xff]
  %v826 = vld [vmem:[%s192 + $0x290] sm:$0xff]
  %v827 = vld [vmem:[%s192 + $0x2a0] sm:$0xff]
  %v828 = vld [vmem:[%s192 + $0x2a8] sm:$0xff]
  %v829 = vld [vmem:[%s192 + $0x2b8] sm:$0xff]
  %v830 = vld [vmem:[%s192 + $0x2c0] sm:$0xff]
  %v831 = vld [vmem:[%s192 + $0x2d0] sm:$0xff]
  %v832 = vld [vmem:[%s192 + $0x2d8] sm:$0xff]
  %v833 = vld [vmem:[%s192 + $0x2e8] sm:$0xff]
  %v834 = vld [vmem:[%s192 + $0x2f0] sm:$0xff]
  %v835 = vld [vmem:[%s192 + $0x300] sm:$0xff]
  %v836 = vld [vmem:[%s192 + $0x308] sm:$0xff]
  %v837 = vld [vmem:[%s192 + $0x318] sm:$0xff]
  %v838 = vld [vmem:[%s192 + $0x320] sm:$0xff]
  %v839 = vld [vmem:[%s1 + $0x3] sm:$0x1]
  %v840 = vperm.slane %v839, 0
  %v841 = vmul.f32 %v775, %v840
  %v842 = vmul.f32 %v776, %v840
  %v843 = vmul.f32 %v777, %v840
  %v844 = vmul.f32 %v778, %v840
  %v845 = vmul.f32 %v779, %v840
  %v846 = vmul.f32 %v780, %v840
  %v847 = vmul.f32 %v781, %v840
  %v848 = vmul.f32 %v782, %v840
  %v849 = vmul.f32 %v783, %v840
  %v850 = vmul.f32 %v784, %v840
  %v851 = vmul.f32 %v785, %v840
  %v852 = vmul.f32 %v786, %v840
  %v853 = vmul.f32 %v787, %v840
  %v854 = vmul.f32 %v788, %v840
  %v855 = vmul.f32 %v789, %v840
  %v856 = vmul.f32 %v790, %v840
  %v857 = vmul.f32 %v791, %v840
  %v858 = vmul.f32 %v792, %v840
  %v859 = vmul.f32 %v793, %v840
  %v860 = vmul.f32 %v794, %v840
  %v861 = vmul.f32 %v795, %v840
  %v862 = vmul.f32 %v796, %v840
  %v863 = vmul.f32 %v797, %v840
  %v864 = vmul.f32 %v798, %v840
  %v865 = vmul.f32 %v799, %v840
  %v866 = vmul.f32 %v800, %v840
  %v867 = vmul.f32 %v801, %v840
  %v868 = vmul.f32 %v802, %v840
  %v869 = vmul.f32 %v803, %v840
  %v870 = vmul.f32 %v804, %v840
  %v871 = vmul.f32 %v805, %v840
  %v872 = vmul.f32 %v806, %v840
  %v873 = vmul.f32 %v807, %v840
  %v874 = vmul.f32 %v808, %v840
  %v875 = vmul.f32 %v809, %v840
  %v876 = vmul.f32 %v810, %v840
  %v877 = vmul.f32 %v811, %v840
  %v878 = vmul.f32 %v812, %v840
  %v879 = vmul.f32 %v813, %v840
  %v880 = vmul.f32 %v814, %v840
  %v881 = vmul.f32 %v815, %v840
  %v882 = vmul.f32 %v816, %v840
  %v883 = vmul.f32 %v817, %v840
  %v884 = vmul.f32 %v818, %v840
  %v885 = vmul.f32 %v819, %v840
  %v886 = vmul.f32 %v820, %v840
  %v887 = vmul.f32 %v821, %v840
  %v888 = vmul.f32 %v822, %v840
  %v889 = vmul.f32 %v823, %v840
  %v890 = vmul.f32 %v824, %v840
  %v891 = vmul.f32 %v825, %v840
  %v892 = vmul.f32 %v826, %v840
  %v893 = vmul.f32 %v827, %v840
  %v894 = vmul.f32 %v828, %v840
  %v895 = vmul.f32 %v829, %v840
  %v896 = vmul.f32 %v830, %v840
  %v897 = vmul.f32 %v831, %v840
  %v898 = vmul.f32 %v832, %v840
  %v899 = vmul.f32 %v833, %v840
  %v900 = vmul.f32 %v834, %v840
  %v901 = vmul.f32 %v835, %v840
  %v902 = vmul.f32 %v836, %v840
  %v903 = vmul.f32 %v837, %v840
  %v904 = vmul.f32 %v838, %v840
  %v905 = vadd.f32 %v711, %v841
  %v906 = vadd.f32 %v712, %v842
  %v907 = vadd.f32 %v713, %v843
  %v908 = vadd.f32 %v714, %v844
  %v909 = vadd.f32 %v715, %v845
  %v910 = vadd.f32 %v716, %v846
  %v911 = vadd.f32 %v717, %v847
  %v912 = vadd.f32 %v718, %v848
  %v913 = vadd.f32 %v719, %v849
  %v914 = vadd.f32 %v720, %v850
  %v915 = vadd.f32 %v721, %v851
  %v916 = vadd.f32 %v722, %v852
  %v917 = vadd.f32 %v723, %v853
  %v918 = vadd.f32 %v724, %v854
  %v919 = vadd.f32 %v725, %v855
  %v920 = vadd.f32 %v726, %v856
  %v921 = vadd.f32 %v727, %v857
  %v922 = vadd.f32 %v728, %v858
  %v923 = vadd.f32 %v729, %v859
  %v924 = vadd.f32 %v730, %v860
  %v925 = vadd.f32 %v731, %v861
  %v926 = vadd.f32 %v732, %v862
  %v927 = vadd.f32 %v733, %v863
  %v928 = vadd.f32 %v734, %v864
  %v929 = vadd.f32 %v735, %v865
  %v930 = vadd.f32 %v736, %v866
  %v931 = vadd.f32 %v737, %v867
  %v932 = vadd.f32 %v738, %v868
  %v933 = vadd.f32 %v739, %v869
  %v934 = vadd.f32 %v740, %v870
  %v935 = vadd.f32 %v741, %v871
  %v936 = vadd.f32 %v742, %v872
  %v937 = vadd.f32 %v743, %v873
  %v938 = vadd.f32 %v744, %v874
  %v939 = vadd.f32 %v745, %v875
  %v940 = vadd.f32 %v746, %v876
  %v941 = vadd.f32 %v747, %v877
  %v942 = vadd.f32 %v748, %v878
  %v943 = vadd.f32 %v749, %v879
  %v944 = vadd.f32 %v750, %v880
  %v945 = vadd.f32 %v751, %v881
  %v946 = vadd.f32 %v752, %v882
  %v947 = vadd.f32 %v753, %v883
  %v948 = vadd.f32 %v754, %v884
  %v949 = vadd.f32 %v755, %v885
  %v950 = vadd.f32 %v756, %v886
  %v951 = vadd.f32 %v757, %v887
  %v952 = vadd.f32 %v758, %v888
  %v953 = vadd.f32 %v759, %v889
  %v954 = vadd.f32 %v760, %v890
  %v955 = vadd.f32 %v761, %v891
  %v956 = vadd.f32 %v762, %v892
  %v957 = vadd.f32 %v763, %v893
  %v958 = vadd.f32 %v764, %v894
  %v959 = vadd.f32 %v765, %v895
  %v960 = vadd.f32 %v766, %v896
  %v961 = vadd.f32 %v767, %v897
  %v962 = vadd.f32 %v768, %v898
  %v963 = vadd.f32 %v769, %v899
  %v964 = vadd.f32 %v770, %v900
  %v965 = vadd.f32 %v771, %v901
  %v966 = vadd.f32 %v772, %v902
  %v967 = vadd.f32 %v773, %v903
  %v968 = vadd.f32 %v774, %v904
  %v969 = vld [vmem:[%s192 + $0x1] sm:$0xff]
  %v970 = vld [vmem:[%s192 + $0x9] sm:$0xff]
  %v971 = vld [vmem:[%s192 + $0x19] sm:$0xff]
  %v972 = vld [vmem:[%s192 + $0x21] sm:$0xff]
  %v973 = vld [vmem:[%s192 + $0x31] sm:$0xff]
  %v974 = vld [vmem:[%s192 + $0x39] sm:$0xff]
  %v975 = vld [vmem:[%s192 + $0x49] sm:$0xff]
  %v976 = vld [vmem:[%s192 + $0x51] sm:$0xff]
  %v977 = vld [vmem:[%s192 + $0x61] sm:$0xff]
  %v978 = vld [vmem:[%s192 + $0x69] sm:$0xff]
  %v979 = vld [vmem:[%s192 + $0x79] sm:$0xff]
  %v980 = vld [vmem:[%s192 + $0x81] sm:$0xff]
  %v981 = vld [vmem:[%s192 + $0x91] sm:$0xff]
  %v982 = vld [vmem:[%s192 + $0x99] sm:$0xff]
  %v983 = vld [vmem:[%s192 + $0xa9] sm:$0xff]
  %v984 = vld [vmem:[%s192 + $0xb1] sm:$0xff]
  %v985 = vld [vmem:[%s192 + $0xc1] sm:$0xff]
  %v986 = vld [vmem:[%s192 + $0xc9] sm:$0xff]
  %v987 = vld [vmem:[%s192 + $0xd9] sm:$0xff]
  %v988 = vld [vmem:[%s192 + $0xe1] sm:$0xff]
  %v989 = vld [vmem:[%s192 + $0xf1] sm:$0xff]
  %v990 = vld [vmem:[%s192 + $0xf9] sm:$0xff]
  %v991 = vld [vmem:[%s192 + $0x109] sm:$0xff]
  %v992 = vld [vmem:[%s192 + $0x111] sm:$0xff]
  %v993 = vld [vmem:[%s192 + $0x121] sm:$0xff]
  %v994 = vld [vmem:[%s192 + $0x129] sm:$0xff]
  %v995 = vld [vmem:[%s192 + $0x139] sm:$0xff]
  %v996 = vld [vmem:[%s192 + $0x141] sm:$0xff]
  %v997 = vld [vmem:[%s192 + $0x151] sm:$0xff]
  %v998 = vld [vmem:[%s192 + $0x159] sm:$0xff]
  %v999 = vld [vmem:[%s192 + $0x169] sm:$0xff]
  %v1000 = vld [vmem:[%s192 + $0x171] sm:$0xff]
  %v1001 = vld [vmem:[%s192 + $0x1b1] sm:$0xff]
  %v1002 = vld [vmem:[%s192 + $0x1b9] sm:$0xff]
  %v1003 = vld [vmem:[%s192 + $0x1c9] sm:$0xff]
  %v1004 = vld [vmem:[%s192 + $0x1d1] sm:$0xff]
  %v1005 = vld [vmem:[%s192 + $0x1e1] sm:$0xff]
  %v1006 = vld [vmem:[%s192 + $0x1e9] sm:$0xff]
  %v1007 = vld [vmem:[%s192 + $0x1f9] sm:$0xff]
  %v1008 = vld [vmem:[%s192 + $0x201] sm:$0xff]
  %v1009 = vld [vmem:[%s192 + $0x211] sm:$0xff]
  %v1010 = vld [vmem:[%s192 + $0x219] sm:$0xff]
  %v1011 = vld [vmem:[%s192 + $0x229] sm:$0xff]
  %v1012 = vld [vmem:[%s192 + $0x231] sm:$0xff]
  %v1013 = vld [vmem:[%s192 + $0x241] sm:$0xff]
  %v1014 = vld [vmem:[%s192 + $0x249] sm:$0xff]
  %v1015 = vld [vmem:[%s192 + $0x259] sm:$0xff]
  %v1016 = vld [vmem:[%s192 + $0x261] sm:$0xff]
  %v1017 = vld [vmem:[%s192 + $0x271] sm:$0xff]
  %v1018 = vld [vmem:[%s192 + $0x279] sm:$0xff]
  %v1019 = vld [vmem:[%s192 + $0x289] sm:$0xff]
  %v1020 = vld [vmem:[%s192 + $0x291] sm:$0xff]
  %v1021 = vld [vmem:[%s192 + $0x2a1] sm:$0xff]
  %v1022 = vld [vmem:[%s192 + $0x2a9] sm:$0xff]
  %v1023 = vld [vmem:[%s192 + $0x2b9] sm:$0xff]
  %v1024 = vld [vmem:[%s192 + $0x2c1] sm:$0xff]
  %v1025 = vld [vmem:[%s192 + $0x2d1] sm:$0xff]
  %v1026 = vld [vmem:[%s192 + $0x2d9] sm:$0xff]
  %v1027 = vld [vmem:[%s192 + $0x2e9] sm:$0xff]
  %v1028 = vld [vmem:[%s192 + $0x2f1] sm:$0xff]
  %v1029 = vld [vmem:[%s192 + $0x301] sm:$0xff]
  %v1030 = vld [vmem:[%s192 + $0x309] sm:$0xff]
  %v1031 = vld [vmem:[%s192 + $0x319] sm:$0xff]
  %v1032 = vld [vmem:[%s192 + $0x321] sm:$0xff]
  %v1033 = vld [vmem:[%s1 + $0x4] sm:$0x1]
  %v1034 = vperm.slane %v1033, 0
  %v1035 = vmul.f32 %v969, %v1034
  %v1036 = vmul.f32 %v970, %v1034
  %v1037 = vmul.f32 %v971, %v1034
  %v1038 = vmul.f32 %v972, %v1034
  %v1039 = vmul.f32 %v973, %v1034
  %v1040 = vmul.f32 %v974, %v1034
  %v1041 = vmul.f32 %v975, %v1034
  %v1042 = vmul.f32 %v976, %v1034
  %v1043 = vmul.f32 %v977, %v1034
  %v1044 = vmul.f32 %v978, %v1034
  %v1045 = vmul.f32 %v979, %v1034
  %v1046 = vmul.f32 %v980, %v1034
  %v1047 = vmul.f32 %v981, %v1034
  %v1048 = vmul.f32 %v982, %v1034
  %v1049 = vmul.f32 %v983, %v1034
  %v1050 = vmul.f32 %v984, %v1034
  %v1051 = vmul.f32 %v985, %v1034
  %v1052 = vmul.f32 %v986, %v1034
  %v1053 = vmul.f32 %v987, %v1034
  %v1054 = vmul.f32 %v988, %v1034
  %v1055 = vmul.f32 %v989, %v1034
  %v1056 = vmul.f32 %v990, %v1034
  %v1057 = vmul.f32 %v991, %v1034
  %v1058 = vmul.f32 %v992, %v1034
  %v1059 = vmul.f32 %v993, %v1034
  %v1060 = vmul.f32 %v994, %v1034
  %v1061 = vmul.f32 %v995, %v1034
  %v1062 = vmul.f32 %v996, %v1034
  %v1063 = vmul.f32 %v997, %v1034
  %v1064 = vmul.f32 %v998, %v1034
  %v1065 = vmul.f32 %v999, %v1034
  %v1066 = vmul.f32 %v1000, %v1034
  %v1067 = vmul.f32 %v1001, %v1034
  %v1068 = vmul.f32 %v1002, %v1034
  %v1069 = vmul.f32 %v1003, %v1034
  %v1070 = vmul.f32 %v1004, %v1034
  %v1071 = vmul.f32 %v1005, %v1034
  %v1072 = vmul.f32 %v1006, %v1034
  %v1073 = vmul.f32 %v1007, %v1034
  %v1074 = vmul.f32 %v1008, %v1034
  %v1075 = vmul.f32 %v1009, %v1034
  %v1076 = vmul.f32 %v1010, %v1034
  %v1077 = vmul.f32 %v1011, %v1034
  %v1078 = vmul.f32 %v1012, %v1034
  %v1079 = vmul.f32 %v1013, %v1034
  %v1080 = vmul.f32 %v1014, %v1034
  %v1081 = vmul.f32 %v1015, %v1034
  %v1082 = vmul.f32 %v1016, %v1034
  %v1083 = vmul.f32 %v1017, %v1034
  %v1084 = vmul.f32 %v1018, %v1034
  %v1085 = vmul.f32 %v1019, %v1034
  %v1086 = vmul.f32 %v1020, %v1034
  %v1087 = vmul.f32 %v1021, %v1034
  %v1088 = vmul.f32 %v1022, %v1034
  %v1089 = vmul.f32 %v1023, %v1034
  %v1090 = vmul.f32 %v1024, %v1034
  %v1091 = vmul.f32 %v1025, %v1034
  %v1092 = vmul.f32 %v1026, %v1034
  %v1093 = vmul.f32 %v1027, %v1034
  %v1094 = vmul.f32 %v1028, %v1034
  %v1095 = vmul.f32 %v1029, %v1034
  %v1096 = vmul.f32 %v1030, %v1034
  %v1097 = vmul.f32 %v1031, %v1034
  %v1098 = vmul.f32 %v1032, %v1034
  %v1099 = vadd.f32 %v905, %v1035
  %v1100 = vadd.f32 %v906, %v1036
  %v1101 = vadd.f32 %v907, %v1037
  %v1102 = vadd.f32 %v908, %v1038
  %v1103 = vadd.f32 %v909, %v1039
  %v1104 = vadd.f32 %v910, %v1040
  %v1105 = vadd.f32 %v911, %v1041
  %v1106 = vadd.f32 %v912, %v1042
  %v1107 = vadd.f32 %v913, %v1043
  %v1108 = vadd.f32 %v914, %v1044
  %v1109 = vadd.f32 %v915, %v1045
  %v1110 = vadd.f32 %v916, %v1046
  %v1111 = vadd.f32 %v917, %v1047
  %v1112 = vadd.f32 %v918, %v1048
  %v1113 = vadd.f32 %v919, %v1049
  %v1114 = vadd.f32 %v920, %v1050
  %v1115 = vadd.f32 %v921, %v1051
  %v1116 = vadd.f32 %v922, %v1052
  %v1117 = vadd.f32 %v923, %v1053
  %v1118 = vadd.f32 %v924, %v1054
  %v1119 = vadd.f32 %v925, %v1055
  %v1120 = vadd.f32 %v926, %v1056
  %v1121 = vadd.f32 %v927, %v1057
  %v1122 = vadd.f32 %v928, %v1058
  %v1123 = vadd.f32 %v929, %v1059
  %v1124 = vadd.f32 %v930, %v1060
  %v1125 = vadd.f32 %v931, %v1061
  %v1126 = vadd.f32 %v932, %v1062
  %v1127 = vadd.f32 %v933, %v1063
  %v1128 = vadd.f32 %v934, %v1064
  %v1129 = vadd.f32 %v935, %v1065
  %v1130 = vadd.f32 %v936, %v1066
  %v1131 = vadd.f32 %v937, %v1067
  %v1132 = vadd.f32 %v938, %v1068
  %v1133 = vadd.f32 %v939, %v1069
  %v1134 = vadd.f32 %v940, %v1070
  %v1135 = vadd.f32 %v941, %v1071
  %v1136 = vadd.f32 %v942, %v1072
  %v1137 = vadd.f32 %v943, %v1073
  %v1138 = vadd.f32 %v944, %v1074
  %v1139 = vadd.f32 %v945, %v1075
  %v1140 = vadd.f32 %v946, %v1076
  %v1141 = vadd.f32 %v947, %v1077
  %v1142 = vadd.f32 %v948, %v1078
  %v1143 = vadd.f32 %v949, %v1079
  %v1144 = vadd.f32 %v950, %v1080
  %v1145 = vadd.f32 %v951, %v1081
  %v1146 = vadd.f32 %v952, %v1082
  %v1147 = vadd.f32 %v953, %v1083
  %v1148 = vadd.f32 %v954, %v1084
  %v1149 = vadd.f32 %v955, %v1085
  %v1150 = vadd.f32 %v956, %v1086
  %v1151 = vadd.f32 %v957, %v1087
  %v1152 = vadd.f32 %v958, %v1088
  %v1153 = vadd.f32 %v959, %v1089
  %v1154 = vadd.f32 %v960, %v1090
  %v1155 = vadd.f32 %v961, %v1091
  %v1156 = vadd.f32 %v962, %v1092
  %v1157 = vadd.f32 %v963, %v1093
  %v1158 = vadd.f32 %v964, %v1094
  %v1159 = vadd.f32 %v965, %v1095
  %v1160 = vadd.f32 %v966, %v1096
  %v1161 = vadd.f32 %v967, %v1097
  %v1162 = vadd.f32 %v968, %v1098
  %v1163 = vld [vmem:[%s192 + $0x2] sm:$0xff]
  %v1164 = vld [vmem:[%s192 + $0xa] sm:$0xff]
  %v1165 = vld [vmem:[%s192 + $0x1a] sm:$0xff]
  %v1166 = vld [vmem:[%s192 + $0x22] sm:$0xff]
  %v1167 = vld [vmem:[%s192 + $0x32] sm:$0xff]
  %v1168 = vld [vmem:[%s192 + $0x3a] sm:$0xff]
  %v1169 = vld [vmem:[%s192 + $0x4a] sm:$0xff]
  %v1170 = vld [vmem:[%s192 + $0x52] sm:$0xff]
  %v1171 = vld [vmem:[%s192 + $0x62] sm:$0xff]
  %v1172 = vld [vmem:[%s192 + $0x6a] sm:$0xff]
  %v1173 = vld [vmem:[%s192 + $0x7a] sm:$0xff]
  %v1174 = vld [vmem:[%s192 + $0x82] sm:$0xff]
  %v1175 = vld [vmem:[%s192 + $0x92] sm:$0xff]
  %v1176 = vld [vmem:[%s192 + $0x9a] sm:$0xff]
  %v1177 = vld [vmem:[%s192 + $0xaa] sm:$0xff]
  %v1178 = vld [vmem:[%s192 + $0xb2] sm:$0xff]
  %v1179 = vld [vmem:[%s192 + $0xc2] sm:$0xff]
  %v1180 = vld [vmem:[%s192 + $0xca] sm:$0xff]
  %v1181 = vld [vmem:[%s192 + $0xda] sm:$0xff]
  %v1182 = vld [vmem:[%s192 + $0xe2] sm:$0xff]
  %v1183 = vld [vmem:[%s192 + $0xf2] sm:$0xff]
  %v1184 = vld [vmem:[%s192 + $0xfa] sm:$0xff]
  %v1185 = vld [vmem:[%s192 + $0x10a] sm:$0xff]
  %v1186 = vld [vmem:[%s192 + $0x112] sm:$0xff]
  %v1187 = vld [vmem:[%s192 + $0x122] sm:$0xff]
  %v1188 = vld [vmem:[%s192 + $0x12a] sm:$0xff]
  %v1189 = vld [vmem:[%s192 + $0x13a] sm:$0xff]
  %v1190 = vld [vmem:[%s192 + $0x142] sm:$0xff]
  %v1191 = vld [vmem:[%s192 + $0x152] sm:$0xff]
  %v1192 = vld [vmem:[%s192 + $0x15a] sm:$0xff]
  %v1193 = vld [vmem:[%s192 + $0x16a] sm:$0xff]
  %v1194 = vld [vmem:[%s192 + $0x172] sm:$0xff]
  %v1195 = vld [vmem:[%s192 + $0x1b2] sm:$0xff]
  %v1196 = vld [vmem:[%s192 + $0x1ba] sm:$0xff]
  %v1197 = vld [vmem:[%s192 + $0x1ca] sm:$0xff]
  %v1198 = vld [vmem:[%s192 + $0x1d2] sm:$0xff]
  %v1199 = vld [vmem:[%s192 + $0x1e2] sm:$0xff]
  %v1200 = vld [vmem:[%s192 + $0x1ea] sm:$0xff]
  %v1201 = vld [vmem:[%s192 + $0x1fa] sm:$0xff]
  %v1202 = vld [vmem:[%s192 + $0x202] sm:$0xff]
  %v1203 = vld [vmem:[%s192 + $0x212] sm:$0xff]
  %v1204 = vld [vmem:[%s192 + $0x21a] sm:$0xff]
  %v1205 = vld [vmem:[%s192 + $0x22a] sm:$0xff]
  %v1206 = vld [vmem:[%s192 + $0x232] sm:$0xff]
  %v1207 = vld [vmem:[%s192 + $0x242] sm:$0xff]
  %v1208 = vld [vmem:[%s192 + $0x24a] sm:$0xff]
  %v1209 = vld [vmem:[%s192 + $0x25a] sm:$0xff]
  %v1210 = vld [vmem:[%s192 + $0x262] sm:$0xff]
  %v1211 = vld [vmem:[%s192 + $0x272] sm:$0xff]
  %v1212 = vld [vmem:[%s192 + $0x27a] sm:$0xff]
  %v1213 = vld [vmem:[%s192 + $0x28a] sm:$0xff]
  %v1214 = vld [vmem:[%s192 + $0x292] sm:$0xff]
  %v1215 = vld [vmem:[%s192 + $0x2a2] sm:$0xff]
  %v1216 = vld [vmem:[%s192 + $0x2aa] sm:$0xff]
  %v1217 = vld [vmem:[%s192 + $0x2ba] sm:$0xff]
  %v1218 = vld [vmem:[%s192 + $0x2c2] sm:$0xff]
  %v1219 = vld [vmem:[%s192 + $0x2d2] sm:$0xff]
  %v1220 = vld [vmem:[%s192 + $0x2da] sm:$0xff]
  %v1221 = vld [vmem:[%s192 + $0x2ea] sm:$0xff]
  %v1222 = vld [vmem:[%s192 + $0x2f2] sm:$0xff]
  %v1223 = vld [vmem:[%s192 + $0x302] sm:$0xff]
  %v1224 = vld [vmem:[%s192 + $0x30a] sm:$0xff]
  %v1225 = vld [vmem:[%s192 + $0x31a] sm:$0xff]
  %v1226 = vld [vmem:[%s192 + $0x322] sm:$0xff]
  %v1227 = vld [vmem:[%s1 + $0x5] sm:$0x1]
  %v1228 = vperm.slane %v1227, 0
  %v1229 = vmul.f32 %v1163, %v1228
  %v1230 = vmul.f32 %v1164, %v1228
  %v1231 = vmul.f32 %v1165, %v1228
  %v1232 = vmul.f32 %v1166, %v1228
  %v1233 = vmul.f32 %v1167, %v1228
  %v1234 = vmul.f32 %v1168, %v1228
  %v1235 = vmul.f32 %v1169, %v1228
  %v1236 = vmul.f32 %v1170, %v1228
  %v1237 = vmul.f32 %v1171, %v1228
  %v1238 = vmul.f32 %v1172, %v1228
  %v1239 = vmul.f32 %v1173, %v1228
  %v1240 = vmul.f32 %v1174, %v1228
  %v1241 = vmul.f32 %v1175, %v1228
  %v1242 = vmul.f32 %v1176, %v1228
  %v1243 = vmul.f32 %v1177, %v1228
  %v1244 = vmul.f32 %v1178, %v1228
  %v1245 = vmul.f32 %v1179, %v1228
  %v1246 = vmul.f32 %v1180, %v1228
  %v1247 = vmul.f32 %v1181, %v1228
  %v1248 = vmul.f32 %v1182, %v1228
  %v1249 = vmul.f32 %v1183, %v1228
  %v1250 = vmul.f32 %v1184, %v1228
  %v1251 = vmul.f32 %v1185, %v1228
  %v1252 = vmul.f32 %v1186, %v1228
  %v1253 = vmul.f32 %v1187, %v1228
  %v1254 = vmul.f32 %v1188, %v1228
  %v1255 = vmul.f32 %v1189, %v1228
  %v1256 = vmul.f32 %v1190, %v1228
  %v1257 = vmul.f32 %v1191, %v1228
  %v1258 = vmul.f32 %v1192, %v1228
  %v1259 = vmul.f32 %v1193, %v1228
  %v1260 = vmul.f32 %v1194, %v1228
  %v1261 = vmul.f32 %v1195, %v1228
  %v1262 = vmul.f32 %v1196, %v1228
  %v1263 = vmul.f32 %v1197, %v1228
  %v1264 = vmul.f32 %v1198, %v1228
  %v1265 = vmul.f32 %v1199, %v1228
  %v1266 = vmul.f32 %v1200, %v1228
  %v1267 = vmul.f32 %v1201, %v1228
  %v1268 = vmul.f32 %v1202, %v1228
  %v1269 = vmul.f32 %v1203, %v1228
  %v1270 = vmul.f32 %v1204, %v1228
  %v1271 = vmul.f32 %v1205, %v1228
  %v1272 = vmul.f32 %v1206, %v1228
  %v1273 = vmul.f32 %v1207, %v1228
  %v1274 = vmul.f32 %v1208, %v1228
  %v1275 = vmul.f32 %v1209, %v1228
  %v1276 = vmul.f32 %v1210, %v1228
  %v1277 = vmul.f32 %v1211, %v1228
  %v1278 = vmul.f32 %v1212, %v1228
  %v1279 = vmul.f32 %v1213, %v1228
  %v1280 = vmul.f32 %v1214, %v1228
  %v1281 = vmul.f32 %v1215, %v1228
  %v1282 = vmul.f32 %v1216, %v1228
  %v1283 = vmul.f32 %v1217, %v1228
  %v1284 = vmul.f32 %v1218, %v1228
  %v1285 = vmul.f32 %v1219, %v1228
  %v1286 = vmul.f32 %v1220, %v1228
  %v1287 = vmul.f32 %v1221, %v1228
  %v1288 = vmul.f32 %v1222, %v1228
  %v1289 = vmul.f32 %v1223, %v1228
  %v1290 = vmul.f32 %v1224, %v1228
  %v1291 = vmul.f32 %v1225, %v1228
  %v1292 = vmul.f32 %v1226, %v1228
  %v1293 = vadd.f32 %v1099, %v1229
  %v1294 = vadd.f32 %v1100, %v1230
  %v1295 = vadd.f32 %v1101, %v1231
  %v1296 = vadd.f32 %v1102, %v1232
  %v1297 = vadd.f32 %v1103, %v1233
  %v1298 = vadd.f32 %v1104, %v1234
  %v1299 = vadd.f32 %v1105, %v1235
  %v1300 = vadd.f32 %v1106, %v1236
  %v1301 = vadd.f32 %v1107, %v1237
  %v1302 = vadd.f32 %v1108, %v1238
  %v1303 = vadd.f32 %v1109, %v1239
  %v1304 = vadd.f32 %v1110, %v1240
  %v1305 = vadd.f32 %v1111, %v1241
  %v1306 = vadd.f32 %v1112, %v1242
  %v1307 = vadd.f32 %v1113, %v1243
  %v1308 = vadd.f32 %v1114, %v1244
  %v1309 = vadd.f32 %v1115, %v1245
  %v1310 = vadd.f32 %v1116, %v1246
  %v1311 = vadd.f32 %v1117, %v1247
  %v1312 = vadd.f32 %v1118, %v1248
  %v1313 = vadd.f32 %v1119, %v1249
  %v1314 = vadd.f32 %v1120, %v1250
  %v1315 = vadd.f32 %v1121, %v1251
  %v1316 = vadd.f32 %v1122, %v1252
  %v1317 = vadd.f32 %v1123, %v1253
  %v1318 = vadd.f32 %v1124, %v1254
  %v1319 = vadd.f32 %v1125, %v1255
  %v1320 = vadd.f32 %v1126, %v1256
  %v1321 = vadd.f32 %v1127, %v1257
  %v1322 = vadd.f32 %v1128, %v1258
  %v1323 = vadd.f32 %v1129, %v1259
  %v1324 = vadd.f32 %v1130, %v1260
  %v1325 = vadd.f32 %v1131, %v1261
  %v1326 = vadd.f32 %v1132, %v1262
  %v1327 = vadd.f32 %v1133, %v1263
  %v1328 = vadd.f32 %v1134, %v1264
  %v1329 = vadd.f32 %v1135, %v1265
  %v1330 = vadd.f32 %v1136, %v1266
  %v1331 = vadd.f32 %v1137, %v1267
  %v1332 = vadd.f32 %v1138, %v1268
  %v1333 = vadd.f32 %v1139, %v1269
  %v1334 = vadd.f32 %v1140, %v1270
  %v1335 = vadd.f32 %v1141, %v1271
  %v1336 = vadd.f32 %v1142, %v1272
  %v1337 = vadd.f32 %v1143, %v1273
  %v1338 = vadd.f32 %v1144, %v1274
  %v1339 = vadd.f32 %v1145, %v1275
  %v1340 = vadd.f32 %v1146, %v1276
  %v1341 = vadd.f32 %v1147, %v1277
  %v1342 = vadd.f32 %v1148, %v1278
  %v1343 = vadd.f32 %v1149, %v1279
  %v1344 = vadd.f32 %v1150, %v1280
  %v1345 = vadd.f32 %v1151, %v1281
  %v1346 = vadd.f32 %v1152, %v1282
  %v1347 = vadd.f32 %v1153, %v1283
  %v1348 = vadd.f32 %v1154, %v1284
  %v1349 = vadd.f32 %v1155, %v1285
  %v1350 = vadd.f32 %v1156, %v1286
  %v1351 = vadd.f32 %v1157, %v1287
  %v1352 = vadd.f32 %v1158, %v1288
  %v1353 = vadd.f32 %v1159, %v1289
  %v1354 = vadd.f32 %v1160, %v1290
  %v1355 = vadd.f32 %v1161, %v1291
  %v1356 = vadd.f32 %v1162, %v1292
  %s1357 = scalar_lea.vmem [#allocation2], 48
  %v1358 = vld [vmem:[%s1357] sm:$0xff]
  %v1359 = vld [vmem:[%s1357 + $0x8] sm:$0xff]
  %v1360 = vld [vmem:[%s1357 + $0x18] sm:$0xff]
  %v1361 = vld [vmem:[%s1357 + $0x20] sm:$0xff]
  %v1362 = vld [vmem:[%s1357 + $0x30] sm:$0xff]
  %v1363 = vld [vmem:[%s1357 + $0x38] sm:$0xff]
  %v1364 = vld [vmem:[%s1357 + $0x48] sm:$0xff]
  %v1365 = vld [vmem:[%s1357 + $0x50] sm:$0xff]
  %v1366 = vld [vmem:[%s1357 + $0x60] sm:$0xff]
  %v1367 = vld [vmem:[%s1357 + $0x68] sm:$0xff]
  %v1368 = vld [vmem:[%s1357 + $0x78] sm:$0xff]
  %v1369 = vld [vmem:[%s1357 + $0x80] sm:$0xff]
  %v1370 = vld [vmem:[%s1357 + $0x90] sm:$0xff]
  %v1371 = vld [vmem:[%s1357 + $0x98] sm:$0xff]
  %v1372 = vld [vmem:[%s1357 + $0xa8] sm:$0xff]
  %v1373 = vld [vmem:[%s1357 + $0xb0] sm:$0xff]
  %v1374 = vld [vmem:[%s1357 + $0xc0] sm:$0xff]
  %v1375 = vld [vmem:[%s1357 + $0xc8] sm:$0xff]
  %v1376 = vld [vmem:[%s1357 + $0xd8] sm:$0xff]
  %v1377 = vld [vmem:[%s1357 + $0xe0] sm:$0xff]
  %v1378 = vld [vmem:[%s1357 + $0xf0] sm:$0xff]
  %v1379 = vld [vmem:[%s1357 + $0xf8] sm:$0xff]
  %v1380 = vld [vmem:[%s1357 + $0x108] sm:$0xff]
  %v1381 = vld [vmem:[%s1357 + $0x110] sm:$0xff]
  %v1382 = vld [vmem:[%s1357 + $0x120] sm:$0xff]
  %v1383 = vld [vmem:[%s1357 + $0x128] sm:$0xff]
  %v1384 = vld [vmem:[%s1357 + $0x138] sm:$0xff]
  %v1385 = vld [vmem:[%s1357 + $0x140] sm:$0xff]
  %v1386 = vld [vmem:[%s1357 + $0x150] sm:$0xff]
  %v1387 = vld [vmem:[%s1357 + $0x158] sm:$0xff]
  %v1388 = vld [vmem:[%s1357 + $0x168] sm:$0xff]
  %v1389 = vld [vmem:[%s1357 + $0x170] sm:$0xff]
  %v1390 = vld [vmem:[%s1357 + $0x1b0] sm:$0xff]
  %v1391 = vld [vmem:[%s1357 + $0x1b8] sm:$0xff]
  %v1392 = vld [vmem:[%s1357 + $0x1c8] sm:$0xff]
  %v1393 = vld [vmem:[%s1357 + $0x1d0] sm:$0xff]
  %v1394 = vld [vmem:[%s1357 + $0x1e0] sm:$0xff]
  %v1395 = vld [vmem:[%s1357 + $0x1e8] sm:$0xff]
  %v1396 = vld [vmem:[%s1357 + $0x1f8] sm:$0xff]
  %v1397 = vld [vmem:[%s1357 + $0x200] sm:$0xff]
  %v1398 = vld [vmem:[%s1357 + $0x210] sm:$0xff]
  %v1399 = vld [vmem:[%s1357 + $0x218] sm:$0xff]
  %v1400 = vld [vmem:[%s1357 + $0x228] sm:$0xff]
  %v1401 = vld [vmem:[%s1357 + $0x230] sm:$0xff]
  %v1402 = vld [vmem:[%s1357 + $0x240] sm:$0xff]
  %v1403 = vld [vmem:[%s1357 + $0x248] sm:$0xff]
  %v1404 = vld [vmem:[%s1357 + $0x258] sm:$0xff]
  %v1405 = vld [vmem:[%s1357 + $0x260] sm:$0xff]
  %v1406 = vld [vmem:[%s1357 + $0x270] sm:$0xff]
  %v1407 = vld [vmem:[%s1357 + $0x278] sm:$0xff]
  %v1408 = vld [vmem:[%s1357 + $0x288] sm:$0xff]
  %v1409 = vld [vmem:[%s1357 + $0x290] sm:$0xff]
  %v1410 = vld [vmem:[%s1357 + $0x2a0] sm:$0xff]
  %v1411 = vld [vmem:[%s1357 + $0x2a8] sm:$0xff]
  %v1412 = vld [vmem:[%s1357 + $0x2b8] sm:$0xff]
  %v1413 = vld [vmem:[%s1357 + $0x2c0] sm:$0xff]
  %v1414 = vld [vmem:[%s1357 + $0x2d0] sm:$0xff]
  %v1415 = vld [vmem:[%s1357 + $0x2d8] sm:$0xff]
  %v1416 = vld [vmem:[%s1357 + $0x2e8] sm:$0xff]
  %v1417 = vld [vmem:[%s1357 + $0x2f0] sm:$0xff]
  %v1418 = vld [vmem:[%s1357 + $0x300] sm:$0xff]
  %v1419 = vld [vmem:[%s1357 + $0x308] sm:$0xff]
  %v1420 = vld [vmem:[%s1357 + $0x318] sm:$0xff]
  %v1421 = vld [vmem:[%s1357 + $0x320] sm:$0xff]
  %v1422 = vld [vmem:[%s1 + $0x6] sm:$0x1]
  %v1423 = vperm.slane %v1422, 0
  %v1424 = vmul.f32 %v1358, %v1423
  %v1425 = vmul.f32 %v1359, %v1423
  %v1426 = vmul.f32 %v1360, %v1423
  %v1427 = vmul.f32 %v1361, %v1423
  %v1428 = vmul.f32 %v1362, %v1423
  %v1429 = vmul.f32 %v1363, %v1423
  %v1430 = vmul.f32 %v1364, %v1423
  %v1431 = vmul.f32 %v1365, %v1423
  %v1432 = vmul.f32 %v1366, %v1423
  %v1433 = vmul.f32 %v1367, %v1423
  %v1434 = vmul.f32 %v1368, %v1423
  %v1435 = vmul.f32 %v1369, %v1423
  %v1436 = vmul.f32 %v1370, %v1423
  %v1437 = vmul.f32 %v1371, %v1423
  %v1438 = vmul.f32 %v1372, %v1423
  %v1439 = vmul.f32 %v1373, %v1423
  %v1440 = vmul.f32 %v1374, %v1423
  %v1441 = vmul.f32 %v1375, %v1423
  %v1442 = vmul.f32 %v1376, %v1423
  %v1443 = vmul.f32 %v1377, %v1423
  %v1444 = vmul.f32 %v1378, %v1423
  %v1445 = vmul.f32 %v1379, %v1423
  %v1446 = vmul.f32 %v1380, %v1423
  %v1447 = vmul.f32 %v1381, %v1423
  %v1448 = vmul.f32 %v1382, %v1423
  %v1449 = vmul.f32 %v1383, %v1423
  %v1450 = vmul.f32 %v1384, %v1423
  %v1451 = vmul.f32 %v1385, %v1423
  %v1452 = vmul.f32 %v1386, %v1423
  %v1453 = vmul.f32 %v1387, %v1423
  %v1454 = vmul.f32 %v1388, %v1423
  %v1455 = vmul.f32 %v1389, %v1423
  %v1456 = vmul.f32 %v1390, %v1423
  %v1457 = vmul.f32 %v1391, %v1423
  %v1458 = vmul.f32 %v1392, %v1423
  %v1459 = vmul.f32 %v1393, %v1423
  %v1460 = vmul.f32 %v1394, %v1423
  %v1461 = vmul.f32 %v1395, %v1423
  %v1462 = vmul.f32 %v1396, %v1423
  %v1463 = vmul.f32 %v1397, %v1423
  %v1464 = vmul.f32 %v1398, %v1423
  %v1465 = vmul.f32 %v1399, %v1423
  %v1466 = vmul.f32 %v1400, %v1423
  %v1467 = vmul.f32 %v1401, %v1423
  %v1468 = vmul.f32 %v1402, %v1423
  %v1469 = vmul.f32 %v1403, %v1423
  %v1470 = vmul.f32 %v1404, %v1423
  %v1471 = vmul.f32 %v1405, %v1423
  %v1472 = vmul.f32 %v1406, %v1423
  %v1473 = vmul.f32 %v1407, %v1423
  %v1474 = vmul.f32 %v1408, %v1423
  %v1475 = vmul.f32 %v1409, %v1423
  %v1476 = vmul.f32 %v1410, %v1423
  %v1477 = vmul.f32 %v1411, %v1423
  %v1478 = vmul.f32 %v1412, %v1423
  %v1479 = vmul.f32 %v1413, %v1423
  %v1480 = vmul.f32 %v1414, %v1423
  %v1481 = vmul.f32 %v1415, %v1423
  %v1482 = vmul.f32 %v1416, %v1423
  %v1483 = vmul.f32 %v1417, %v1423
  %v1484 = vmul.f32 %v1418, %v1423
  %v1485 = vmul.f32 %v1419, %v1423
  %v1486 = vmul.f32 %v1420, %v1423
  %v1487 = vmul.f32 %v1421, %v1423
  %v1488 = vadd.f32 %v1293, %v1424
  %v1489 = vadd.f32 %v1294, %v1425
  %v1490 = vadd.f32 %v1295, %v1426
  %v1491 = vadd.f32 %v1296, %v1427
  %v1492 = vadd.f32 %v1297, %v1428
  %v1493 = vadd.f32 %v1298, %v1429
  %v1494 = vadd.f32 %v1299, %v1430
  %v1495 = vadd.f32 %v1300, %v1431
  %v1496 = vadd.f32 %v1301, %v1432
  %v1497 = vadd.f32 %v1302, %v1433
  %v1498 = vadd.f32 %v1303, %v1434
  %v1499 = vadd.f32 %v1304, %v1435
  %v1500 = vadd.f32 %v1305, %v1436
  %v1501 = vadd.f32 %v1306, %v1437
  %v1502 = vadd.f32 %v1307, %v1438
  %v1503 = vadd.f32 %v1308, %v1439
  %v1504 = vadd.f32 %v1309, %v1440
  %v1505 = vadd.f32 %v1310, %v1441
  %v1506 = vadd.f32 %v1311, %v1442
  %v1507 = vadd.f32 %v1312, %v1443
  %v1508 = vadd.f32 %v1313, %v1444
  %v1509 = vadd.f32 %v1314, %v1445
  %v1510 = vadd.f32 %v1315, %v1446
  %v1511 = vadd.f32 %v1316, %v1447
  %v1512 = vadd.f32 %v1317, %v1448
  %v1513 = vadd.f32 %v1318, %v1449
  %v1514 = vadd.f32 %v1319, %v1450
  %v1515 = vadd.f32 %v1320, %v1451
  %v1516 = vadd.f32 %v1321, %v1452
  %v1517 = vadd.f32 %v1322, %v1453
  %v1518 = vadd.f32 %v1323, %v1454
  %v1519 = vadd.f32 %v1324, %v1455
  %v1520 = vadd.f32 %v1325, %v1456
  %v1521 = vadd.f32 %v1326, %v1457
  %v1522 = vadd.f32 %v1327, %v1458
  %v1523 = vadd.f32 %v1328, %v1459
  %v1524 = vadd.f32 %v1329, %v1460
  %v1525 = vadd.f32 %v1330, %v1461
  %v1526 = vadd.f32 %v1331, %v1462
  %v1527 = vadd.f32 %v1332, %v1463
  %v1528 = vadd.f32 %v1333, %v1464
  %v1529 = vadd.f32 %v1334, %v1465
  %v1530 = vadd.f32 %v1335, %v1466
  %v1531 = vadd.f32 %v1336, %v1467
  %v1532 = vadd.f32 %v1337, %v1468
  %v1533 = vadd.f32 %v1338, %v1469
  %v1534 = vadd.f32 %v1339, %v1470
  %v1535 = vadd.f32 %v1340, %v1471
  %v1536 = vadd.f32 %v1341, %v1472
  %v1537 = vadd.f32 %v1342, %v1473
  %v1538 = vadd.f32 %v1343, %v1474
  %v1539 = vadd.f32 %v1344, %v1475
  %v1540 = vadd.f32 %v1345, %v1476
  %v1541 = vadd.f32 %v1346, %v1477
  %v1542 = vadd.f32 %v1347, %v1478
  %v1543 = vadd.f32 %v1348, %v1479
  %v1544 = vadd.f32 %v1349, %v1480
  %v1545 = vadd.f32 %v1350, %v1481
  %v1546 = vadd.f32 %v1351, %v1482
  %v1547 = vadd.f32 %v1352, %v1483
  %v1548 = vadd.f32 %v1353, %v1484
  %v1549 = vadd.f32 %v1354, %v1485
  %v1550 = vadd.f32 %v1355, %v1486
  %v1551 = vadd.f32 %v1356, %v1487
  %v1552 = vld [vmem:[%s1357 + $0x1] sm:$0xff]
  %v1553 = vld [vmem:[%s1357 + $0x9] sm:$0xff]
  %v1554 = vld [vmem:[%s1357 + $0x19] sm:$0xff]
  %v1555 = vld [vmem:[%s1357 + $0x21] sm:$0xff]
  %v1556 = vld [vmem:[%s1357 + $0x31] sm:$0xff]
  %v1557 = vld [vmem:[%s1357 + $0x39] sm:$0xff]
  %v1558 = vld [vmem:[%s1357 + $0x49] sm:$0xff]
  %v1559 = vld [vmem:[%s1357 + $0x51] sm:$0xff]
  %v1560 = vld [vmem:[%s1357 + $0x61] sm:$0xff]
  %v1561 = vld [vmem:[%s1357 + $0x69] sm:$0xff]
  %v1562 = vld [vmem:[%s1357 + $0x79] sm:$0xff]
  %v1563 = vld [vmem:[%s1357 + $0x81] sm:$0xff]
  %v1564 = vld [vmem:[%s1357 + $0x91] sm:$0xff]
  %v1565 = vld [vmem:[%s1357 + $0x99] sm:$0xff]
  %v1566 = vld [vmem:[%s1357 + $0xa9] sm:$0xff]
  %v1567 = vld [vmem:[%s1357 + $0xb1] sm:$0xff]
  %v1568 = vld [vmem:[%s1357 + $0xc1] sm:$0xff]
  %v1569 = vld [vmem:[%s1357 + $0xc9] sm:$0xff]
  %v1570 = vld [vmem:[%s1357 + $0xd9] sm:$0xff]
  %v1571 = vld [vmem:[%s1357 + $0xe1] sm:$0xff]
  %v1572 = vld [vmem:[%s1357 + $0xf1] sm:$0xff]
  %v1573 = vld [vmem:[%s1357 + $0xf9] sm:$0xff]
  %v1574 = vld [vmem:[%s1357 + $0x109] sm:$0xff]
  %v1575 = vld [vmem:[%s1357 + $0x111] sm:$0xff]
  %v1576 = vld [vmem:[%s1357 + $0x121] sm:$0xff]
  %v1577 = vld [vmem:[%s1357 + $0x129] sm:$0xff]
  %v1578 = vld [vmem:[%s1357 + $0x139] sm:$0xff]
  %v1579 = vld [vmem:[%s1357 + $0x141] sm:$0xff]
  %v1580 = vld [vmem:[%s1357 + $0x151] sm:$0xff]
  %v1581 = vld [vmem:[%s1357 + $0x159] sm:$0xff]
  %v1582 = vld [vmem:[%s1357 + $0x169] sm:$0xff]
  %v1583 = vld [vmem:[%s1357 + $0x171] sm:$0xff]
  %v1584 = vld [vmem:[%s1357 + $0x1b1] sm:$0xff]
  %v1585 = vld [vmem:[%s1357 + $0x1b9] sm:$0xff]
  %v1586 = vld [vmem:[%s1357 + $0x1c9] sm:$0xff]
  %v1587 = vld [vmem:[%s1357 + $0x1d1] sm:$0xff]
  %v1588 = vld [vmem:[%s1357 + $0x1e1] sm:$0xff]
  %v1589 = vld [vmem:[%s1357 + $0x1e9] sm:$0xff]
  %v1590 = vld [vmem:[%s1357 + $0x1f9] sm:$0xff]
  %v1591 = vld [vmem:[%s1357 + $0x201] sm:$0xff]
  %v1592 = vld [vmem:[%s1357 + $0x211] sm:$0xff]
  %v1593 = vld [vmem:[%s1357 + $0x219] sm:$0xff]
  %v1594 = vld [vmem:[%s1357 + $0x229] sm:$0xff]
  %v1595 = vld [vmem:[%s1357 + $0x231] sm:$0xff]
  %v1596 = vld [vmem:[%s1357 + $0x241] sm:$0xff]
  %v1597 = vld [vmem:[%s1357 + $0x249] sm:$0xff]
  %v1598 = vld [vmem:[%s1357 + $0x259] sm:$0xff]
  %v1599 = vld [vmem:[%s1357 + $0x261] sm:$0xff]
  %v1600 = vld [vmem:[%s1357 + $0x271] sm:$0xff]
  %v1601 = vld [vmem:[%s1357 + $0x279] sm:$0xff]
  %v1602 = vld [vmem:[%s1357 + $0x289] sm:$0xff]
  %v1603 = vld [vmem:[%s1357 + $0x291] sm:$0xff]
  %v1604 = vld [vmem:[%s1357 + $0x2a1] sm:$0xff]
  %v1605 = vld [vmem:[%s1357 + $0x2a9] sm:$0xff]
  %v1606 = vld [vmem:[%s1357 + $0x2b9] sm:$0xff]
  %v1607 = vld [vmem:[%s1357 + $0x2c1] sm:$0xff]
  %v1608 = vld [vmem:[%s1357 + $0x2d1] sm:$0xff]
  %v1609 = vld [vmem:[%s1357 + $0x2d9] sm:$0xff]
  %v1610 = vld [vmem:[%s1357 + $0x2e9] sm:$0xff]
  %v1611 = vld [vmem:[%s1357 + $0x2f1] sm:$0xff]
  %v1612 = vld [vmem:[%s1357 + $0x301] sm:$0xff]
  %v1613 = vld [vmem:[%s1357 + $0x309] sm:$0xff]
  %v1614 = vld [vmem:[%s1357 + $0x319] sm:$0xff]
  %v1615 = vld [vmem:[%s1357 + $0x321] sm:$0xff]
  %v1616 = vld [vmem:[%s1 + $0x7] sm:$0x1]
  %v1617 = vperm.slane %v1616, 0
  %v1618 = vmul.f32 %v1552, %v1617
  %v1619 = vmul.f32 %v1553, %v1617
  %v1620 = vmul.f32 %v1554, %v1617
  %v1621 = vmul.f32 %v1555, %v1617
  %v1622 = vmul.f32 %v1556, %v1617
  %v1623 = vmul.f32 %v1557, %v1617
  %v1624 = vmul.f32 %v1558, %v1617
  %v1625 = vmul.f32 %v1559, %v1617
  %v1626 = vmul.f32 %v1560, %v1617
  %v1627 = vmul.f32 %v1561, %v1617
  %v1628 = vmul.f32 %v1562, %v1617
  %v1629 = vmul.f32 %v1563, %v1617
  %v1630 = vmul.f32 %v1564, %v1617
  %v1631 = vmul.f32 %v1565, %v1617
  %v1632 = vmul.f32 %v1566, %v1617
  %v1633 = vmul.f32 %v1567, %v1617
  %v1634 = vmul.f32 %v1568, %v1617
  %v1635 = vmul.f32 %v1569, %v1617
  %v1636 = vmul.f32 %v1570, %v1617
  %v1637 = vmul.f32 %v1571, %v1617
  %v1638 = vmul.f32 %v1572, %v1617
  %v1639 = vmul.f32 %v1573, %v1617
  %v1640 = vmul.f32 %v1574, %v1617
  %v1641 = vmul.f32 %v1575, %v1617
  %v1642 = vmul.f32 %v1576, %v1617
  %v1643 = vmul.f32 %v1577, %v1617
  %v1644 = vmul.f32 %v1578, %v1617
  %v1645 = vmul.f32 %v1579, %v1617
  %v1646 = vmul.f32 %v1580, %v1617
  %v1647 = vmul.f32 %v1581, %v1617
  %v1648 = vmul.f32 %v1582, %v1617
  %v1649 = vmul.f32 %v1583, %v1617
  %v1650 = vmul.f32 %v1584, %v1617
  %v1651 = vmul.f32 %v1585, %v1617
  %v1652 = vmul.f32 %v1586, %v1617
  %v1653 = vmul.f32 %v1587, %v1617
  %v1654 = vmul.f32 %v1588, %v1617
  %v1655 = vmul.f32 %v1589, %v1617
  %v1656 = vmul.f32 %v1590, %v1617
  %v1657 = vmul.f32 %v1591, %v1617
  %v1658 = vmul.f32 %v1592, %v1617
  %v1659 = vmul.f32 %v1593, %v1617
  %v1660 = vmul.f32 %v1594, %v1617
  %v1661 = vmul.f32 %v1595, %v1617
  %v1662 = vmul.f32 %v1596, %v1617
  %v1663 = vmul.f32 %v1597, %v1617
  %v1664 = vmul.f32 %v1598, %v1617
  %v1665 = vmul.f32 %v1599, %v1617
  %v1666 = vmul.f32 %v1600, %v1617
  %v1667 = vmul.f32 %v1601, %v1617
  %v1668 = vmul.f32 %v1602, %v1617
  %v1669 = vmul.f32 %v1603, %v1617
  %v1670 = vmul.f32 %v1604, %v1617
  %v1671 = vmul.f32 %v1605, %v1617
  %v1672 = vmul.f32 %v1606, %v1617
  %v1673 = vmul.f32 %v1607, %v1617
  %v1674 = vmul.f32 %v1608, %v1617
  %v1675 = vmul.f32 %v1609, %v1617
  %v1676 = vmul.f32 %v1610, %v1617
  %v1677 = vmul.f32 %v1611, %v1617
  %v1678 = vmul.f32 %v1612, %v1617
  %v1679 = vmul.f32 %v1613, %v1617
  %v1680 = vmul.f32 %v1614, %v1617
  %v1681 = vmul.f32 %v1615, %v1617
  %v1682 = vadd.f32 %v1488, %v1618
  %v1683 = vadd.f32 %v1489, %v1619
  %v1684 = vadd.f32 %v1490, %v1620
  %v1685 = vadd.f32 %v1491, %v1621
  %v1686 = vadd.f32 %v1492, %v1622
  %v1687 = vadd.f32 %v1493, %v1623
  %v1688 = vadd.f32 %v1494, %v1624
  %v1689 = vadd.f32 %v1495, %v1625
  %v1690 = vadd.f32 %v1496, %v1626
  %v1691 = vadd.f32 %v1497, %v1627
  %v1692 = vadd.f32 %v1498, %v1628
  %v1693 = vadd.f32 %v1499, %v1629
  %v1694 = vadd.f32 %v1500, %v1630
  %v1695 = vadd.f32 %v1501, %v1631
  %v1696 = vadd.f32 %v1502, %v1632
  %v1697 = vadd.f32 %v1503, %v1633
  %v1698 = vadd.f32 %v1504, %v1634
  %v1699 = vadd.f32 %v1505, %v1635
  %v1700 = vadd.f32 %v1506, %v1636
  %v1701 = vadd.f32 %v1507, %v1637
  %v1702 = vadd.f32 %v1508, %v1638
  %v1703 = vadd.f32 %v1509, %v1639
  %v1704 = vadd.f32 %v1510, %v1640
  %v1705 = vadd.f32 %v1511, %v1641
  %v1706 = vadd.f32 %v1512, %v1642
  %v1707 = vadd.f32 %v1513, %v1643
  %v1708 = vadd.f32 %v1514, %v1644
  %v1709 = vadd.f32 %v1515, %v1645
  %v1710 = vadd.f32 %v1516, %v1646
  %v1711 = vadd.f32 %v1517, %v1647
  %v1712 = vadd.f32 %v1518, %v1648
  %v1713 = vadd.f32 %v1519, %v1649
  %v1714 = vadd.f32 %v1520, %v1650
  %v1715 = vadd.f32 %v1521, %v1651
  %v1716 = vadd.f32 %v1522, %v1652
  %v1717 = vadd.f32 %v1523, %v1653
  %v1718 = vadd.f32 %v1524, %v1654
  %v1719 = vadd.f32 %v1525, %v1655
  %v1720 = vadd.f32 %v1526, %v1656
  %v1721 = vadd.f32 %v1527, %v1657
  %v1722 = vadd.f32 %v1528, %v1658
  %v1723 = vadd.f32 %v1529, %v1659
  %v1724 = vadd.f32 %v1530, %v1660
  %v1725 = vadd.f32 %v1531, %v1661
  %v1726 = vadd.f32 %v1532, %v1662
  %v1727 = vadd.f32 %v1533, %v1663
  %v1728 = vadd.f32 %v1534, %v1664
  %v1729 = vadd.f32 %v1535, %v1665
  %v1730 = vadd.f32 %v1536, %v1666
  %v1731 = vadd.f32 %v1537, %v1667
  %v1732 = vadd.f32 %v1538, %v1668
  %v1733 = vadd.f32 %v1539, %v1669
  %v1734 = vadd.f32 %v1540, %v1670
  %v1735 = vadd.f32 %v1541, %v1671
  %v1736 = vadd.f32 %v1542, %v1672
  %v1737 = vadd.f32 %v1543, %v1673
  %v1738 = vadd.f32 %v1544, %v1674
  %v1739 = vadd.f32 %v1545, %v1675
  %v1740 = vadd.f32 %v1546, %v1676
  %v1741 = vadd.f32 %v1547, %v1677
  %v1742 = vadd.f32 %v1548, %v1678
  %v1743 = vadd.f32 %v1549, %v1679
  %v1744 = vadd.f32 %v1550, %v1680
  %v1745 = vadd.f32 %v1551, %v1681
  %v1746 = vld [vmem:[%s1357 + $0x2] sm:$0xff]
  %v1747 = vld [vmem:[%s1357 + $0xa] sm:$0xff]
  %v1748 = vld [vmem:[%s1357 + $0x1a] sm:$0xff]
  %v1749 = vld [vmem:[%s1357 + $0x22] sm:$0xff]
  %v1750 = vld [vmem:[%s1357 + $0x32] sm:$0xff]
  %v1751 = vld [vmem:[%s1357 + $0x3a] sm:$0xff]
  %v1752 = vld [vmem:[%s1357 + $0x4a] sm:$0xff]
  %v1753 = vld [vmem:[%s1357 + $0x52] sm:$0xff]
  %v1754 = vld [vmem:[%s1357 + $0x62] sm:$0xff]
  %v1755 = vld [vmem:[%s1357 + $0x6a] sm:$0xff]
  %v1756 = vld [vmem:[%s1357 + $0x7a] sm:$0xff]
  %v1757 = vld [vmem:[%s1357 + $0x82] sm:$0xff]
  %v1758 = vld [vmem:[%s1357 + $0x92] sm:$0xff]
  %v1759 = vld [vmem:[%s1357 + $0x9a] sm:$0xff]
  %v1760 = vld [vmem:[%s1357 + $0xaa] sm:$0xff]
  %v1761 = vld [vmem:[%s1357 + $0xb2] sm:$0xff]
  %v1762 = vld [vmem:[%s1357 + $0xc2] sm:$0xff]
  %v1763 = vld [vmem:[%s1357 + $0xca] sm:$0xff]
  %v1764 = vld [vmem:[%s1357 + $0xda] sm:$0xff]
  %v1765 = vld [vmem:[%s1357 + $0xe2] sm:$0xff]
  %v1766 = vld [vmem:[%s1357 + $0xf2] sm:$0xff]
  %v1767 = vld [vmem:[%s1357 + $0xfa] sm:$0xff]
  %v1768 = vld [vmem:[%s1357 + $0x10a] sm:$0xff]
  %v1769 = vld [vmem:[%s1357 + $0x112] sm:$0xff]
  %v1770 = vld [vmem:[%s1357 + $0x122] sm:$0xff]
  %v1771 = vld [vmem:[%s1357 + $0x12a] sm:$0xff]
  %v1772 = vld [vmem:[%s1357 + $0x13a] sm:$0xff]
  %v1773 = vld [vmem:[%s1357 + $0x142] sm:$0xff]
  %v1774 = vld [vmem:[%s1357 + $0x152] sm:$0xff]
  %v1775 = vld [vmem:[%s1357 + $0x15a] sm:$0xff]
  %v1776 = vld [vmem:[%s1357 + $0x16a] sm:$0xff]
  %v1777 = vld [vmem:[%s1357 + $0x172] sm:$0xff]
  %v1778 = vld [vmem:[%s1357 + $0x1b2] sm:$0xff]
  %v1779 = vld [vmem:[%s1357 + $0x1ba] sm:$0xff]
  %v1780 = vld [vmem:[%s1357 + $0x1ca] sm:$0xff]
  %v1781 = vld [vmem:[%s1357 + $0x1d2] sm:$0xff]
  %v1782 = vld [vmem:[%s1357 + $0x1e2] sm:$0xff]
  %v1783 = vld [vmem:[%s1357 + $0x1ea] sm:$0xff]
  %v1784 = vld [vmem:[%s1357 + $0x1fa] sm:$0xff]
  %v1785 = vld [vmem:[%s1357 + $0x202] sm:$0xff]
  %v1786 = vld [vmem:[%s1357 + $0x212] sm:$0xff]
  %v1787 = vld [vmem:[%s1357 + $0x21a] sm:$0xff]
  %v1788 = vld [vmem:[%s1357 + $0x22a] sm:$0xff]
  %v1789 = vld [vmem:[%s1357 + $0x232] sm:$0xff]
  %v1790 = vld [vmem:[%s1357 + $0x242] sm:$0xff]
  %v1791 = vld [vmem:[%s1357 + $0x24a] sm:$0xff]
  %v1792 = vld [vmem:[%s1357 + $0x25a] sm:$0xff]
  %v1793 = vld [vmem:[%s1357 + $0x262] sm:$0xff]
  %v1794 = vld [vmem:[%s1357 + $0x272] sm:$0xff]
  %v1795 = vld [vmem:[%s1357 + $0x27a] sm:$0xff]
  %v1796 = vld [vmem:[%s1357 + $0x28a] sm:$0xff]
  %v1797 = vld [vmem:[%s1357 + $0x292] sm:$0xff]
  %v1798 = vld [vmem:[%s1357 + $0x2a2] sm:$0xff]
  %v1799 = vld [vmem:[%s1357 + $0x2aa] sm:$0xff]
  %v1800 = vld [vmem:[%s1357 + $0x2ba] sm:$0xff]
  %v1801 = vld [vmem:[%s1357 + $0x2c2] sm:$0xff]
  %v1802 = vld [vmem:[%s1357 + $0x2d2] sm:$0xff]
  %v1803 = vld [vmem:[%s1357 + $0x2da] sm:$0xff]
  %v1804 = vld [vmem:[%s1357 + $0x2ea] sm:$0xff]
  %v1805 = vld [vmem:[%s1357 + $0x2f2] sm:$0xff]
  %v1806 = vld [vmem:[%s1357 + $0x302] sm:$0xff]
  %v1807 = vld [vmem:[%s1357 + $0x30a] sm:$0xff]
  %v1808 = vld [vmem:[%s1357 + $0x31a] sm:$0xff]
  %v1809 = vld [vmem:[%s1357 + $0x322] sm:$0xff]
  %v1810 = vld [vmem:[%s1 + $0x8] sm:$0x1]
  %v1811 = vperm.slane %v1810, 0
  %v1812 = vmul.f32 %v1746, %v1811
  %v1813 = vmul.f32 %v1747, %v1811
  %v1814 = vmul.f32 %v1748, %v1811
  %v1815 = vmul.f32 %v1749, %v1811
  %v1816 = vmul.f32 %v1750, %v1811
  %v1817 = vmul.f32 %v1751, %v1811
  %v1818 = vmul.f32 %v1752, %v1811
  %v1819 = vmul.f32 %v1753, %v1811
  %v1820 = vmul.f32 %v1754, %v1811
  %v1821 = vmul.f32 %v1755, %v1811
  %v1822 = vmul.f32 %v1756, %v1811
  %v1823 = vmul.f32 %v1757, %v1811
  %v1824 = vmul.f32 %v1758, %v1811
  %v1825 = vmul.f32 %v1759, %v1811
  %v1826 = vmul.f32 %v1760, %v1811
  %v1827 = vmul.f32 %v1761, %v1811
  %v1828 = vmul.f32 %v1762, %v1811
  %v1829 = vmul.f32 %v1763, %v1811
  %v1830 = vmul.f32 %v1764, %v1811
  %v1831 = vmul.f32 %v1765, %v1811
  %v1832 = vmul.f32 %v1766, %v1811
  %v1833 = vmul.f32 %v1767, %v1811
  %v1834 = vmul.f32 %v1768, %v1811
  %v1835 = vmul.f32 %v1769, %v1811
  %v1836 = vmul.f32 %v1770, %v1811
  %v1837 = vmul.f32 %v1771, %v1811
  %v1838 = vmul.f32 %v1772, %v1811
  %v1839 = vmul.f32 %v1773, %v1811
  %v1840 = vmul.f32 %v1774, %v1811
  %v1841 = vmul.f32 %v1775, %v1811
  %v1842 = vmul.f32 %v1776, %v1811
  %v1843 = vmul.f32 %v1777, %v1811
  %v1844 = vmul.f32 %v1778, %v1811
  %v1845 = vmul.f32 %v1779, %v1811
  %v1846 = vmul.f32 %v1780, %v1811
  %v1847 = vmul.f32 %v1781, %v1811
  %v1848 = vmul.f32 %v1782, %v1811
  %v1849 = vmul.f32 %v1783, %v1811
  %v1850 = vmul.f32 %v1784, %v1811
  %v1851 = vmul.f32 %v1785, %v1811
  %v1852 = vmul.f32 %v1786, %v1811
  %v1853 = vmul.f32 %v1787, %v1811
  %v1854 = vmul.f32 %v1788, %v1811
  %v1855 = vmul.f32 %v1789, %v1811
  %v1856 = vmul.f32 %v1790, %v1811
  %v1857 = vmul.f32 %v1791, %v1811
  %v1858 = vmul.f32 %v1792, %v1811
  %v1859 = vmul.f32 %v1793, %v1811
  %v1860 = vmul.f32 %v1794, %v1811
  %v1861 = vmul.f32 %v1795, %v1811
  %v1862 = vmul.f32 %v1796, %v1811
  %v1863 = vmul.f32 %v1797, %v1811
  %v1864 = vmul.f32 %v1798, %v1811
  %v1865 = vmul.f32 %v1799, %v1811
  %v1866 = vmul.f32 %v1800, %v1811
  %v1867 = vmul.f32 %v1801, %v1811
  %v1868 = vmul.f32 %v1802, %v1811
  %v1869 = vmul.f32 %v1803, %v1811
  %v1870 = vmul.f32 %v1804, %v1811
  %v1871 = vmul.f32 %v1805, %v1811
  %v1872 = vmul.f32 %v1806, %v1811
  %v1873 = vmul.f32 %v1807, %v1811
  %v1874 = vmul.f32 %v1808, %v1811
  %v1875 = vmul.f32 %v1809, %v1811
  %v1876 = vadd.f32 %v1682, %v1812
  %v1877 = vadd.f32 %v1683, %v1813
  %v1878 = vadd.f32 %v1684, %v1814
  %v1879 = vadd.f32 %v1685, %v1815
  %v1880 = vadd.f32 %v1686, %v1816
  %v1881 = vadd.f32 %v1687, %v1817
  %v1882 = vadd.f32 %v1688, %v1818
  %v1883 = vadd.f32 %v1689, %v1819
  %v1884 = vadd.f32 %v1690, %v1820
  %v1885 = vadd.f32 %v1691, %v1821
  %v1886 = vadd.f32 %v1692, %v1822
  %v1887 = vadd.f32 %v1693, %v1823
  %v1888 = vadd.f32 %v1694, %v1824
  %v1889 = vadd.f32 %v1695, %v1825
  %v1890 = vadd.f32 %v1696, %v1826
  %v1891 = vadd.f32 %v1697, %v1827
  %v1892 = vadd.f32 %v1698, %v1828
  %v1893 = vadd.f32 %v1699, %v1829
  %v1894 = vadd.f32 %v1700, %v1830
  %v1895 = vadd.f32 %v1701, %v1831
  %v1896 = vadd.f32 %v1702, %v1832
  %v1897 = vadd.f32 %v1703, %v1833
  %v1898 = vadd.f32 %v1704, %v1834
  %v1899 = vadd.f32 %v1705, %v1835
  %v1900 = vadd.f32 %v1706, %v1836
  %v1901 = vadd.f32 %v1707, %v1837
  %v1902 = vadd.f32 %v1708, %v1838
  %v1903 = vadd.f32 %v1709, %v1839
  %v1904 = vadd.f32 %v1710, %v1840
  %v1905 = vadd.f32 %v1711, %v1841
  %v1906 = vadd.f32 %v1712, %v1842
  %v1907 = vadd.f32 %v1713, %v1843
  %v1908 = vadd.f32 %v1714, %v1844
  %v1909 = vadd.f32 %v1715, %v1845
  %v1910 = vadd.f32 %v1716, %v1846
  %v1911 = vadd.f32 %v1717, %v1847
  %v1912 = vadd.f32 %v1718, %v1848
  %v1913 = vadd.f32 %v1719, %v1849
  %v1914 = vadd.f32 %v1720, %v1850
  %v1915 = vadd.f32 %v1721, %v1851
  %v1916 = vadd.f32 %v1722, %v1852
  %v1917 = vadd.f32 %v1723, %v1853
  %v1918 = vadd.f32 %v1724, %v1854
  %v1919 = vadd.f32 %v1725, %v1855
  %v1920 = vadd.f32 %v1726, %v1856
  %v1921 = vadd.f32 %v1727, %v1857
  %v1922 = vadd.f32 %v1728, %v1858
  %v1923 = vadd.f32 %v1729, %v1859
  %v1924 = vadd.f32 %v1730, %v1860
  %v1925 = vadd.f32 %v1731, %v1861
  %v1926 = vadd.f32 %v1732, %v1862
  %v1927 = vadd.f32 %v1733, %v1863
  %v1928 = vadd.f32 %v1734, %v1864
  %v1929 = vadd.f32 %v1735, %v1865
  %v1930 = vadd.f32 %v1736, %v1866
  %v1931 = vadd.f32 %v1737, %v1867
  %v1932 = vadd.f32 %v1738, %v1868
  %v1933 = vadd.f32 %v1739, %v1869
  %v1934 = vadd.f32 %v1740, %v1870
  %v1935 = vadd.f32 %v1741, %v1871
  %v1936 = vadd.f32 %v1742, %v1872
  %v1937 = vadd.f32 %v1743, %v1873
  %v1938 = vadd.f32 %v1744, %v1874
  %v1939 = vadd.f32 %v1745, %v1875
  %v1940 = vld [vmem:[%s2] sm:$0x1]
  %v1942 = vperm.slane %v1940, 0
  %v1944 = vadd.f32 %v1876, %v1942
  %v1945 = vadd.f32 %v1877, %v1942
  %v1946 = vadd.f32 %v1878, %v1942
  %v1947 = vadd.f32 %v1879, %v1942
  %v1948 = vadd.f32 %v1880, %v1942
  %v1949 = vadd.f32 %v1881, %v1942
  %v1950 = vadd.f32 %v1882, %v1942
  %v1951 = vadd.f32 %v1883, %v1942
  %v1952 = vadd.f32 %v1884, %v1942
  %v1953 = vadd.f32 %v1885, %v1942
  %v1954 = vadd.f32 %v1886, %v1942
  %v1955 = vadd.f32 %v1887, %v1942
  %v1956 = vadd.f32 %v1888, %v1942
  %v1957 = vadd.f32 %v1889, %v1942
  %v1958 = vadd.f32 %v1890, %v1942
  %v1959 = vadd.f32 %v1891, %v1942
  %v1960 = vadd.f32 %v1892, %v1942
  %v1961 = vadd.f32 %v1893, %v1942
  %v1962 = vadd.f32 %v1894, %v1942
  %v1963 = vadd.f32 %v1895, %v1942
  %v1964 = vadd.f32 %v1896, %v1942
  %v1965 = vadd.f32 %v1897, %v1942
  %v1966 = vadd.f32 %v1898, %v1942
  %v1967 = vadd.f32 %v1899, %v1942
  %v1968 = vadd.f32 %v1900, %v1942
  %v1969 = vadd.f32 %v1901, %v1942
  %v1970 = vadd.f32 %v1902, %v1942
  %v1971 = vadd.f32 %v1903, %v1942
  %v1972 = vadd.f32 %v1904, %v1942
  %v1973 = vadd.f32 %v1905, %v1942
  %v1974 = vadd.f32 %v1906, %v1942
  %v1975 = vadd.f32 %v1907, %v1942
  %v1976 = vadd.f32 %v1908, %v1942
  %v1977 = vadd.f32 %v1909, %v1942
  %v1978 = vadd.f32 %v1910, %v1942
  %v1979 = vadd.f32 %v1911, %v1942
  %v1980 = vadd.f32 %v1912, %v1942
  %v1981 = vadd.f32 %v1913, %v1942
  %v1982 = vadd.f32 %v1914, %v1942
  %v1983 = vadd.f32 %v1915, %v1942
  %v1984 = vadd.f32 %v1916, %v1942
  %v1985 = vadd.f32 %v1917, %v1942
  %v1986 = vadd.f32 %v1918, %v1942
  %v1987 = vadd.f32 %v1919, %v1942
  %v1988 = vadd.f32 %v1920, %v1942
  %v1989 = vadd.f32 %v1921, %v1942
  %v1990 = vadd.f32 %v1922, %v1942
  %v1991 = vadd.f32 %v1923, %v1942
  %v1992 = vadd.f32 %v1924, %v1942
  %v1993 = vadd.f32 %v1925, %v1942
  %v1994 = vadd.f32 %v1926, %v1942
  %v1995 = vadd.f32 %v1927, %v1942
  %v1996 = vadd.f32 %v1928, %v1942
  %v1997 = vadd.f32 %v1929, %v1942
  %v1998 = vadd.f32 %v1930, %v1942
  %v1999 = vadd.f32 %v1931, %v1942
  %v2000 = vadd.f32 %v1932, %v1942
  %v2001 = vadd.f32 %v1933, %v1942
  %v2002 = vadd.f32 %v1934, %v1942
  %v2003 = vadd.f32 %v1935, %v1942
  %v2004 = vadd.f32 %v1936, %v1942
  %v2005 = vadd.f32 %v1937, %v1942
  %v2006 = vadd.f32 %v1938, %v1942
  %v2007 = vadd.f32 %v1939, %v1942
  %v2008 = vadd.f32 %v1944, %v1945
  %v2009 = vadd.f32 %v2008, %v1946
  %v2010 = vadd.f32 %v2009, %v1947
  %v2011 = vadd.f32 %v2010, %v1948
  %v2012 = vadd.f32 %v2011, %v1949
  %v2013 = vadd.f32 %v2012, %v1950
  %v2014 = vadd.f32 %v2013, %v1951
  %v2015 = vadd.f32 %v2014, %v1952
  %v2016 = vadd.f32 %v2015, %v1953
  %v2017 = vadd.f32 %v2016, %v1954
  %v2018 = vadd.f32 %v2017, %v1955
  %v2019 = vadd.f32 %v2018, %v1956
  %v2020 = vadd.f32 %v2019, %v1957
  %v2021 = vadd.f32 %v2020, %v1958
  %v2022 = vadd.f32 %v2021, %v1959
  %v2023 = vadd.f32 %v2022, %v1960
  %v2024 = vadd.f32 %v2023, %v1961
  %v2025 = vadd.f32 %v2024, %v1962
  %v2026 = vadd.f32 %v2025, %v1963
  %v2027 = vadd.f32 %v2026, %v1964
  %v2028 = vadd.f32 %v2027, %v1965
  %v2029 = vadd.f32 %v2028, %v1966
  %v2030 = vadd.f32 %v2029, %v1967
  %v2031 = vadd.f32 %v2030, %v1968
  %v2032 = vadd.f32 %v2031, %v1969
  %v2033 = vadd.f32 %v2032, %v1970
  %v2034 = vadd.f32 %v2033, %v1971
  %v2035 = vadd.f32 %v2034, %v1972
  %v2036 = vadd.f32 %v2035, %v1973
  %v2037 = vadd.f32 %v2036, %v1974
  %v2038 = vadd.f32 %v2037, %v1975
  %v2039 = vadd.f32 %v2038, %v1976
  %v2040 = vadd.f32 %v2039, %v1977
  %v2041 = vadd.f32 %v2040, %v1978
  %v2042 = vadd.f32 %v2041, %v1979
  %v2043 = vadd.f32 %v2042, %v1980
  %v2044 = vadd.f32 %v2043, %v1981
  %v2045 = vadd.f32 %v2044, %v1982
  %v2046 = vadd.f32 %v2045, %v1983
  %v2047 = vadd.f32 %v2046, %v1984
  %v2048 = vadd.f32 %v2047, %v1985
  %v2049 = vadd.f32 %v2048, %v1986
  %v2050 = vadd.f32 %v2049, %v1987
  %v2051 = vadd.f32 %v2050, %v1988
  %v2052 = vadd.f32 %v2051, %v1989
  %v2053 = vadd.f32 %v2052, %v1990
  %v2054 = vadd.f32 %v2053, %v1991
  %v2055 = vadd.f32 %v2054, %v1992
  %v2056 = vadd.f32 %v2055, %v1993
  %v2057 = vadd.f32 %v2056, %v1994
  %v2058 = vadd.f32 %v2057, %v1995
  %v2059 = vadd.f32 %v2058, %v1996
  %v2060 = vadd.f32 %v2059, %v1997
  %v2061 = vadd.f32 %v2060, %v1998
  %v2062 = vadd.f32 %v2061, %v1999
  %v2063 = vadd.f32 %v2062, %v2000
  %v2064 = vadd.f32 %v2063, %v2001
  %v2065 = vadd.f32 %v2064, %v2002
  %v2066 = vadd.f32 %v2065, %v2003
  %v2067 = vadd.f32 %v2066, %v2004
  %v2068 = vadd.f32 %v2067, %v2005
  %v2069 = vadd.f32 %v2068, %v2006
  %v2070 = vadd.f32 %v2069, %v2007
  %v2071 = vrot.slane %v2070, 4
  %v2072 = vadd.f32 %v2070, %v2071
  %v2073 = vrot.slane %v2072, 2
  %v2074 = vadd.f32 %v2072, %v2073
  %v2075 = vrot.slane %v2074, 1
  %v2076 = vadd.f32 %v2074, %v2075
  %v2077 = vmul.f32 %v2076, 0.001953125
  %v2078 = vsub.f32 %v1944, %v2077
  %v2079 = vsub.f32 %v1945, %v2077
  %v2080 = vsub.f32 %v1946, %v2077
  %v2081 = vsub.f32 %v1947, %v2077
  %v2082 = vsub.f32 %v1948, %v2077
  %v2083 = vsub.f32 %v1949, %v2077
  %v2084 = vsub.f32 %v1950, %v2077
  %v2085 = vsub.f32 %v1951, %v2077
  %v2086 = vsub.f32 %v1952, %v2077
  %v2087 = vsub.f32 %v1953, %v2077
  %v2088 = vsub.f32 %v1954, %v2077
  %v2089 = vsub.f32 %v1955, %v2077
  %v2090 = vsub.f32 %v1956, %v2077
  %v2091 = vsub.f32 %v1957, %v2077
  %v2092 = vsub.f32 %v1958, %v2077
  %v2093 = vsub.f32 %v1959, %v2077
  %v2094 = vsub.f32 %v1960, %v2077
  %v2095 = vsub.f32 %v1961, %v2077
  %v2096 = vsub.f32 %v1962, %v2077
  %v2097 = vsub.f32 %v1963, %v2077
  %v2098 = vsub.f32 %v1964, %v2077
  %v2099 = vsub.f32 %v1965, %v2077
  %v2100 = vsub.f32 %v1966, %v2077
  %v2101 = vsub.f32 %v1967, %v2077
  %v2102 = vsub.f32 %v1968, %v2077
  %v2103 = vsub.f32 %v1969, %v2077
  %v2104 = vsub.f32 %v1970, %v2077
  %v2105 = vsub.f32 %v1971, %v2077
  %v2106 = vsub.f32 %v1972, %v2077
  %v2107 = vsub.f32 %v1973, %v2077
  %v2108 = vsub.f32 %v1974, %v2077
  %v2109 = vsub.f32 %v1975, %v2077
  %v2110 = vsub.f32 %v1976, %v2077
  %v2111 = vsub.f32 %v1977, %v2077
  %v2112 = vsub.f32 %v1978, %v2077
  %v2113 = vsub.f32 %v1979, %v2077
  %v2114 = vsub.f32 %v1980, %v2077
  %v2115 = vsub.f32 %v1981, %v2077
  %v2116 = vsub.f32 %v1982, %v2077
  %v2117 = vsub.f32 %v1983, %v2077
  %v2118 = vsub.f32 %v1984, %v2077
  %v2119 = vsub.f32 %v1985, %v2077
  %v2120 = vsub.f32 %v1986, %v2077
  %v2121 = vsub.f32 %v1987, %v2077
  %v2122 = vsub.f32 %v1988, %v2077
  %v2123 = vsub.f32 %v1989, %v2077
  %v2124 = vsub.f32 %v1990, %v2077
  %v2125 = vsub.f32 %v1991, %v2077
  %v2126 = vsub.f32 %v1992, %v2077
  %v2127 = vsub.f32 %v1993, %v2077
  %v2128 = vsub.f32 %v1994, %v2077
  %v2129 = vsub.f32 %v1995, %v2077
  %v2130 = vsub.f32 %v1996, %v2077
  %v2131 = vsub.f32 %v1997, %v2077
  %v2132 = vsub.f32 %v1998, %v2077
  %v2133 = vsub.f32 %v1999, %v2077
  %v2134 = vsub.f32 %v2000, %v2077
  %v2135 = vsub.f32 %v2001, %v2077
  %v2136 = vsub.f32 %v2002, %v2077
  %v2137 = vsub.f32 %v2003, %v2077
  %v2138 = vsub.f32 %v2004, %v2077
  %v2139 = vsub.f32 %v2005, %v2077
  %v2140 = vsub.f32 %v2006, %v2077
  %v2141 = vsub.f32 %v2007, %v2077
  %v2142 = vmul.f32 %v2078, %v2078
  %v2143 = vmul.f32 %v2079, %v2079
  %v2144 = vmul.f32 %v2080, %v2080
  %v2145 = vmul.f32 %v2081, %v2081
  %v2146 = vmul.f32 %v2082, %v2082
  %v2147 = vmul.f32 %v2083, %v2083
  %v2148 = vmul.f32 %v2084, %v2084
  %v2149 = vmul.f32 %v2085, %v2085
  %v2150 = vmul.f32 %v2086, %v2086
  %v2151 = vmul.f32 %v2087, %v2087
  %v2152 = vmul.f32 %v2088, %v2088
  %v2153 = vmul.f32 %v2089, %v2089
  %v2154 = vmul.f32 %v2090, %v2090
  %v2155 = vmul.f32 %v2091, %v2091
  %v2156 = vmul.f32 %v2092, %v2092
  %v2157 = vmul.f32 %v2093, %v2093
  %v2158 = vmul.f32 %v2094, %v2094
  %v2159 = vmul.f32 %v2095, %v2095
  %v2160 = vmul.f32 %v2096, %v2096
  %v2161 = vmul.f32 %v2097, %v2097
  %v2162 = vmul.f32 %v2098, %v2098
  %v2163 = vmul.f32 %v2099, %v2099
  %v2164 = vmul.f32 %v2100, %v2100
  %v2165 = vmul.f32 %v2101, %v2101
  %v2166 = vmul.f32 %v2102, %v2102
  %v2167 = vmul.f32 %v2103, %v2103
  %v2168 = vmul.f32 %v2104, %v2104
  %v2169 = vmul.f32 %v2105, %v2105
  %v2170 = vmul.f32 %v2106, %v2106
  %v2171 = vmul.f32 %v2107, %v2107
  %v2172 = vmul.f32 %v2108, %v2108
  %v2173 = vmul.f32 %v2109, %v2109
  %v2174 = vmul.f32 %v2110, %v2110
  %v2175 = vmul.f32 %v2111, %v2111
  %v2176 = vmul.f32 %v2112, %v2112
  %v2177 = vmul.f32 %v2113, %v2113
  %v2178 = vmul.f32 %v2114, %v2114
  %v2179 = vmul.f32 %v2115, %v2115
  %v2180 = vmul.f32 %v2116, %v2116
  %v2181 = vmul.f32 %v2117, %v2117
  %v2182 = vmul.f32 %v2118, %v2118
  %v2183 = vmul.f32 %v2119, %v2119
  %v2184 = vmul.f32 %v2120, %v2120
  %v2185 = vmul.f32 %v2121, %v2121
  %v2186 = vmul.f32 %v2122, %v2122
  %v2187 = vmul.f32 %v2123, %v2123
  %v2188 = vmul.f32 %v2124, %v2124
  %v2189 = vmul.f32 %v2125, %v2125
  %v2190 = vmul.f32 %v2126, %v2126
  %v2191 = vmul.f32 %v2127, %v2127
  %v2192 = vmul.f32 %v2128, %v2128
  %v2193 = vmul.f32 %v2129, %v2129
  %v2194 = vmul.f32 %v2130, %v2130
  %v2195 = vmul.f32 %v2131, %v2131
  %v2196 = vmul.f32 %v2132, %v2132
  %v2197 = vmul.f32 %v2133, %v2133
  %v2198 = vmul.f32 %v2134, %v2134
  %v2199 = vmul.f32 %v2135, %v2135
  %v2200 = vmul.f32 %v2136, %v2136
  %v2201 = vmul.f32 %v2137, %v2137
  %v2202 = vmul.f32 %v2138, %v2138
  %v2203 = vmul.f32 %v2139, %v2139
  %v2204 = vmul.f32 %v2140, %v2140
  %v2205 = vmul.f32 %v2141, %v2141
  %v2206 = vadd.f32 %v2142, %v2143
  %v2207 = vadd.f32 %v2206, %v2144
  %v2208 = vadd.f32 %v2207, %v2145
  %v2209 = vadd.f32 %v2208, %v2146
  %v2210 = vadd.f32 %v2209, %v2147
  %v2211 = vadd.f32 %v2210, %v2148
  %v2212 = vadd.f32 %v2211, %v2149
  %v2213 = vadd.f32 %v2212, %v2150
  %v2214 = vadd.f32 %v2213, %v2151
  %v2215 = vadd.f32 %v2214, %v2152
  %v2216 = vadd.f32 %v2215, %v2153
  %v2217 = vadd.f32 %v2216, %v2154
  %v2218 = vadd.f32 %v2217, %v2155
  %v2219 = vadd.f32 %v2218, %v2156
  %v2220 = vadd.f32 %v2219, %v2157
  %v2221 = vadd.f32 %v2220, %v2158
  %v2222 = vadd.f32 %v2221, %v2159
  %v2223 = vadd.f32 %v2222, %v2160
  %v2224 = vadd.f32 %v2223, %v2161
  %v2225 = vadd.f32 %v2224, %v2162
  %v2226 = vadd.f32 %v2225, %v2163
  %v2227 = vadd.f32 %v2226, %v2164
  %v2228 = vadd.f32 %v2227, %v2165
  %v2229 = vadd.f32 %v2228, %v2166
  %v2230 = vadd.f32 %v2229, %v2167
  %v2231 = vadd.f32 %v2230, %v2168
  %v2232 = vadd.f32 %v2231, %v2169
  %v2233 = vadd.f32 %v2232, %v2170
  %v2234 = vadd.f32 %v2233, %v2171
  %v2235 = vadd.f32 %v2234, %v2172
  %v2236 = vadd.f32 %v2235, %v2173
  %v2237 = vadd.f32 %v2236, %v2174
  %v2238 = vadd.f32 %v2237, %v2175
  %v2239 = vadd.f32 %v2238, %v2176
  %v2240 = vadd.f32 %v2239, %v2177
  %v2241 = vadd.f32 %v2240, %v2178
  %v2242 = vadd.f32 %v2241, %v2179
  %v2243 = vadd.f32 %v2242, %v2180
  %v2244 = vadd.f32 %v2243, %v2181
  %v2245 = vadd.f32 %v2244, %v2182
  %v2246 = vadd.f32 %v2245, %v2183
  %v2247 = vadd.f32 %v2246, %v2184
  %v2248 = vadd.f32 %v2247, %v2185
  %v2249 = vadd.f32 %v2248, %v2186
  %v2250 = vadd.f32 %v2249, %v2187
  %v2251 = vadd.f32 %v2250, %v2188
  %v2252 = vadd.f32 %v2251, %v2189
  %v2253 = vadd.f32 %v2252, %v2190
  %v2254 = vadd.f32 %v2253, %v2191
  %v2255 = vadd.f32 %v2254, %v2192
  %v2256 = vadd.f32 %v2255, %v2193
  %v2257 = vadd.f32 %v2256, %v2194
  %v2258 = vadd.f32 %v2257, %v2195
  %v2259 = vadd.f32 %v2258, %v2196
  %v2260 = vadd.f32 %v2259, %v2197
  %v2261 = vadd.f32 %v2260, %v2198
  %v2262 = vadd.f32 %v2261, %v2199
  %v2263 = vadd.f32 %v2262, %v2200
  %v2264 = vadd.f32 %v2263, %v2201
  %v2265 = vadd.f32 %v2264, %v2202
  %v2266 = vadd.f32 %v2265, %v2203
  %v2267 = vadd.f32 %v2266, %v2204
  %v2268 = vadd.f32 %v2267, %v2205
  %v2269 = vrot.slane %v2268, 4
  %v2270 = vadd.f32 %v2268, %v2269
  %v2271 = vrot.slane %v2270, 2
  %v2272 = vadd.f32 %v2270, %v2271
  %v2273 = vrot.slane %v2272, 1
  %v2274 = vadd.f32 %v2272, %v2273
  %v2275 = vmul.f32 %v2274, 0.001953125
  %v2276 = vadd.f32 %v2275, 1e-05
  %v2277 = vrsqrt.pop %v2276
  %v2278 = vmul.f32 %v2277, %v2276
  %v2279 = vmul.f32 %v2278, %v2277
  %v2280 = vmul.f32 0.5, %v2279
  %v2281 = vsub.f32 1.5, %v2280
  %v2282 = vmul.f32 %v2277, %v2281
  %vm2283 = vweird.f32 %v2276
  %vm2284 = vweird.f32 %v2277
  %vm2285 = vmor %vm2283, %vm2284
  %v2286 = vsel %vm2285, %v2277, %v2282
  %v2287 = vmul.f32 %v2078, %v2286
  %v2288 = vmul.f32 %v2079, %v2286
  %v2289 = vmul.f32 %v2080, %v2286
  %v2290 = vmul.f32 %v2081, %v2286
  %v2291 = vmul.f32 %v2082, %v2286
  %v2292 = vmul.f32 %v2083, %v2286
  %v2293 = vmul.f32 %v2084, %v2286
  %v2294 = vmul.f32 %v2085, %v2286
  %v2295 = vmul.f32 %v2086, %v2286
  %v2296 = vmul.f32 %v2087, %v2286
  %v2297 = vmul.f32 %v2088, %v2286
  %v2298 = vmul.f32 %v2089, %v2286
  %v2299 = vmul.f32 %v2090, %v2286
  %v2300 = vmul.f32 %v2091, %v2286
  %v2301 = vmul.f32 %v2092, %v2286
  %v2302 = vmul.f32 %v2093, %v2286
  %v2303 = vmul.f32 %v2094, %v2286
  %v2304 = vmul.f32 %v2095, %v2286
  %v2305 = vmul.f32 %v2096, %v2286
  %v2306 = vmul.f32 %v2097, %v2286
  %v2307 = vmul.f32 %v2098, %v2286
  %v2308 = vmul.f32 %v2099, %v2286
  %v2309 = vmul.f32 %v2100, %v2286
  %v2310 = vmul.f32 %v2101, %v2286
  %v2311 = vmul.f32 %v2102, %v2286
  %v2312 = vmul.f32 %v2103, %v2286
  %v2313 = vmul.f32 %v2104, %v2286
  %v2314 = vmul.f32 %v2105, %v2286
  %v2315 = vmul.f32 %v2106, %v2286
  %v2316 = vmul.f32 %v2107, %v2286
  %v2317 = vmul.f32 %v2108, %v2286
  %v2318 = vmul.f32 %v2109, %v2286
  %v2319 = vmul.f32 %v2110, %v2286
  %v2320 = vmul.f32 %v2111, %v2286
  %v2321 = vmul.f32 %v2112, %v2286
  %v2322 = vmul.f32 %v2113, %v2286
  %v2323 = vmul.f32 %v2114, %v2286
  %v2324 = vmul.f32 %v2115, %v2286
  %v2325 = vmul.f32 %v2116, %v2286
  %v2326 = vmul.f32 %v2117, %v2286
  %v2327 = vmul.f32 %v2118, %v2286
  %v2328 = vmul.f32 %v2119, %v2286
  %v2329 = vmul.f32 %v2120, %v2286
  %v2330 = vmul.f32 %v2121, %v2286
  %v2331 = vmul.f32 %v2122, %v2286
  %v2332 = vmul.f32 %v2123, %v2286
  %v2333 = vmul.f32 %v2124, %v2286
  %v2334 = vmul.f32 %v2125, %v2286
  %v2335 = vmul.f32 %v2126, %v2286
  %v2336 = vmul.f32 %v2127, %v2286
  %v2337 = vmul.f32 %v2128, %v2286
  %v2338 = vmul.f32 %v2129, %v2286
  %v2339 = vmul.f32 %v2130, %v2286
  %v2340 = vmul.f32 %v2131, %v2286
  %v2341 = vmul.f32 %v2132, %v2286
  %v2342 = vmul.f32 %v2133, %v2286
  %v2343 = vmul.f32 %v2134, %v2286
  %v2344 = vmul.f32 %v2135, %v2286
  %v2345 = vmul.f32 %v2136, %v2286
  %v2346 = vmul.f32 %v2137, %v2286
  %v2347 = vmul.f32 %v2138, %v2286
  %v2348 = vmul.f32 %v2139, %v2286
  %v2349 = vmul.f32 %v2140, %v2286
  %v2350 = vmul.f32 %v2141, %v2286
  %v2351 = vld [vmem:[%s3] sm:$0x1]
  %v2353 = vperm.slane %v2351, 0
  %v2355 = vmul.f32 %v2287, %v2353
  %v2356 = vmul.f32 %v2288, %v2353
  %v2357 = vmul.f32 %v2289, %v2353
  %v2358 = vmul.f32 %v2290, %v2353
  %v2359 = vmul.f32 %v2291, %v2353
  %v2360 = vmul.f32 %v2292, %v2353
  %v2361 = vmul.f32 %v2293, %v2353
  %v2362 = vmul.f32 %v2294, %v2353
  %v2363 = vmul.f32 %v2295, %v2353
  %v2364 = vmul.f32 %v2296, %v2353
  %v2365 = vmul.f32 %v2297, %v2353
  %v2366 = vmul.f32 %v2298, %v2353
  %v2367 = vmul.f32 %v2299, %v2353
  %v2368 = vmul.f32 %v2300, %v2353
  %v2369 = vmul.f32 %v2301, %v2353
  %v2370 = vmul.f32 %v2302, %v2353
  %v2371 = vmul.f32 %v2303, %v2353
  %v2372 = vmul.f32 %v2304, %v2353
  %v2373 = vmul.f32 %v2305, %v2353
  %v2374 = vmul.f32 %v2306, %v2353
  %v2375 = vmul.f32 %v2307, %v2353
  %v2376 = vmul.f32 %v2308, %v2353
  %v2377 = vmul.f32 %v2309, %v2353
  %v2378 = vmul.f32 %v2310, %v2353
  %v2379 = vmul.f32 %v2311, %v2353
  %v2380 = vmul.f32 %v2312, %v2353
  %v2381 = vmul.f32 %v2313, %v2353
  %v2382 = vmul.f32 %v2314, %v2353
  %v2383 = vmul.f32 %v2315, %v2353
  %v2384 = vmul.f32 %v2316, %v2353
  %v2385 = vmul.f32 %v2317, %v2353
  %v2386 = vmul.f32 %v2318, %v2353
  %v2387 = vmul.f32 %v2319, %v2353
  %v2388 = vmul.f32 %v2320, %v2353
  %v2389 = vmul.f32 %v2321, %v2353
  %v2390 = vmul.f32 %v2322, %v2353
  %v2391 = vmul.f32 %v2323, %v2353
  %v2392 = vmul.f32 %v2324, %v2353
  %v2393 = vmul.f32 %v2325, %v2353
  %v2394 = vmul.f32 %v2326, %v2353
  %v2395 = vmul.f32 %v2327, %v2353
  %v2396 = vmul.f32 %v2328, %v2353
  %v2397 = vmul.f32 %v2329, %v2353
  %v2398 = vmul.f32 %v2330, %v2353
  %v2399 = vmul.f32 %v2331, %v2353
  %v2400 = vmul.f32 %v2332, %v2353
  %v2401 = vmul.f32 %v2333, %v2353
  %v2402 = vmul.f32 %v2334, %v2353
  %v2403 = vmul.f32 %v2335, %v2353
  %v2404 = vmul.f32 %v2336, %v2353
  %v2405 = vmul.f32 %v2337, %v2353
  %v2406 = vmul.f32 %v2338, %v2353
  %v2407 = vmul.f32 %v2339, %v2353
  %v2408 = vmul.f32 %v2340, %v2353
  %v2409 = vmul.f32 %v2341, %v2353
  %v2410 = vmul.f32 %v2342, %v2353
  %v2411 = vmul.f32 %v2343, %v2353
  %v2412 = vmul.f32 %v2344, %v2353
  %v2413 = vmul.f32 %v2345, %v2353
  %v2414 = vmul.f32 %v2346, %v2353
  %v2415 = vmul.f32 %v2347, %v2353
  %v2416 = vmul.f32 %v2348, %v2353
  %v2417 = vmul.f32 %v2349, %v2353
  %v2418 = vmul.f32 %v2350, %v2353
  %v2419 = vld [vmem:[%s4] sm:$0x1]
  %v2421 = vperm.slane %v2419, 0
  %v2423 = vadd.f32 %v2355, %v2421
  %v2424 = vadd.f32 %v2356, %v2421
  %v2425 = vadd.f32 %v2357, %v2421
  %v2426 = vadd.f32 %v2358, %v2421
  %v2427 = vadd.f32 %v2359, %v2421
  %v2428 = vadd.f32 %v2360, %v2421
  %v2429 = vadd.f32 %v2361, %v2421
  %v2430 = vadd.f32 %v2362, %v2421
  %v2431 = vadd.f32 %v2363, %v2421
  %v2432 = vadd.f32 %v2364, %v2421
  %v2433 = vadd.f32 %v2365, %v2421
  %v2434 = vadd.f32 %v2366, %v2421
  %v2435 = vadd.f32 %v2367, %v2421
  %v2436 = vadd.f32 %v2368, %v2421
  %v2437 = vadd.f32 %v2369, %v2421
  %v2438 = vadd.f32 %v2370, %v2421
  %v2439 = vadd.f32 %v2371, %v2421
  %v2440 = vadd.f32 %v2372, %v2421
  %v2441 = vadd.f32 %v2373, %v2421
  %v2442 = vadd.f32 %v2374, %v2421
  %v2443 = vadd.f32 %v2375, %v2421
  %v2444 = vadd.f32 %v2376, %v2421
  %v2445 = vadd.f32 %v2377, %v2421
  %v2446 = vadd.f32 %v2378, %v2421
  %v2447 = vadd.f32 %v2379, %v2421
  %v2448 = vadd.f32 %v2380, %v2421
  %v2449 = vadd.f32 %v2381, %v2421
  %v2450 = vadd.f32 %v2382, %v2421
  %v2451 = vadd.f32 %v2383, %v2421
  %v2452 = vadd.f32 %v2384, %v2421
  %v2453 = vadd.f32 %v2385, %v2421
  %v2454 = vadd.f32 %v2386, %v2421
  %v2455 = vadd.f32 %v2387, %v2421
  %v2456 = vadd.f32 %v2388, %v2421
  %v2457 = vadd.f32 %v2389, %v2421
  %v2458 = vadd.f32 %v2390, %v2421
  %v2459 = vadd.f32 %v2391, %v2421
  %v2460 = vadd.f32 %v2392, %v2421
  %v2461 = vadd.f32 %v2393, %v2421
  %v2462 = vadd.f32 %v2394, %v2421
  %v2463 = vadd.f32 %v2395, %v2421
  %v2464 = vadd.f32 %v2396, %v2421
  %v2465 = vadd.f32 %v2397, %v2421
  %v2466 = vadd.f32 %v2398, %v2421
  %v2467 = vadd.f32 %v2399, %v2421
  %v2468 = vadd.f32 %v2400, %v2421
  %v2469 = vadd.f32 %v2401, %v2421
  %v2470 = vadd.f32 %v2402, %v2421
  %v2471 = vadd.f32 %v2403, %v2421
  %v2472 = vadd.f32 %v2404, %v2421
  %v2473 = vadd.f32 %v2405, %v2421
  %v2474 = vadd.f32 %v2406, %v2421
  %v2475 = vadd.f32 %v2407, %v2421
  %v2476 = vadd.f32 %v2408, %v2421
  %v2477 = vadd.f32 %v2409, %v2421
  %v2478 = vadd.f32 %v2410, %v2421
  %v2479 = vadd.f32 %v2411, %v2421
  %v2480 = vadd.f32 %v2412, %v2421
  %v2481 = vadd.f32 %v2413, %v2421
  %v2482 = vadd.f32 %v2414, %v2421
  %v2483 = vadd.f32 %v2415, %v2421
  %v2484 = vadd.f32 %v2416, %v2421
  %v2485 = vadd.f32 %v2417, %v2421
  %v2486 = vadd.f32 %v2418, %v2421
  %v2487 = vmax.f32 %v969, %v2423
  %v2488 = vmax.f32 %v970, %v2424
  %v2489 = vmax.f32 %v971, %v2425
  %v2490 = vmax.f32 %v972, %v2426
  %v2491 = vmax.f32 %v973, %v2427
  %v2492 = vmax.f32 %v974, %v2428
  %v2493 = vmax.f32 %v975, %v2429
  %v2494 = vmax.f32 %v976, %v2430
  %v2495 = vmax.f32 %v977, %v2431
  %v2496 = vmax.f32 %v978, %v2432
  %v2497 = vmax.f32 %v979, %v2433
  %v2498 = vmax.f32 %v980, %v2434
  %v2499 = vmax.f32 %v981, %v2435
  %v2500 = vmax.f32 %v982, %v2436
  %v2501 = vmax.f32 %v983, %v2437
  %v2502 = vmax.f32 %v984, %v2438
  %v2503 = vmax.f32 %v985, %v2439
  %v2504 = vmax.f32 %v986, %v2440
  %v2505 = vmax.f32 %v987, %v2441
  %v2506 = vmax.f32 %v988, %v2442
  %v2507 = vmax.f32 %v989, %v2443
  %v2508 = vmax.f32 %v990, %v2444
  %v2509 = vmax.f32 %v991, %v2445
  %v2510 = vmax.f32 %v992, %v2446
  %v2511 = vmax.f32 %v993, %v2447
  %v2512 = vmax.f32 %v994, %v2448
  %v2513 = vmax.f32 %v995, %v2449
  %v2514 = vmax.f32 %v996, %v2450
  %v2515 = vmax.f32 %v997, %v2451
  %v2516 = vmax.f32 %v998, %v2452
  %v2517 = vmax.f32 %v999, %v2453
  %v2518 = vmax.f32 %v1000, %v2454
  %v2519 = vmax.f32 %v1001, %v2455
  %v2520 = vmax.f32 %v1002, %v2456
  %v2521 = vmax.f32 %v1003, %v2457
  %v2522 = vmax.f32 %v1004, %v2458
  %v2523 = vmax.f32 %v1005, %v2459
  %v2524 = vmax.f32 %v1006, %v2460
  %v2525 = vmax.f32 %v1007, %v2461
  %v2526 = vmax.f32 %v1008, %v2462
  %v2527 = vmax.f32 %v1009, %v2463
  %v2528 = vmax.f32 %v1010, %v2464
  %v2529 = vmax.f32 %v1011, %v2465
  %v2530 = vmax.f32 %v1012, %v2466
  %v2531 = vmax.f32 %v1013, %v2467
  %v2532 = vmax.f32 %v1014, %v2468
  %v2533 = vmax.f32 %v1015, %v2469
  %v2534 = vmax.f32 %v1016, %v2470
  %v2535 = vmax.f32 %v1017, %v2471
  %v2536 = vmax.f32 %v1018, %v2472
  %v2537 = vmax.f32 %v1019, %v2473
  %v2538 = vmax.f32 %v1020, %v2474
  %v2539 = vmax.f32 %v1021, %v2475
  %v2540 = vmax.f32 %v1022, %v2476
  %v2541 = vmax.f32 %v1023, %v2477
  %v2542 = vmax.f32 %v1024, %v2478
  %v2543 = vmax.f32 %v1025, %v2479
  %v2544 = vmax.f32 %v1026, %v2480
  %v2545 = vmax.f32 %v1027, %v2481
  %v2546 = vmax.f32 %v1028, %v2482
  %v2547 = vmax.f32 %v1029, %v2483
  %v2548 = vmax.f32 %v1030, %v2484
  %v2549 = vmax.f32 %v1031, %v2485
  %v2550 = vmax.f32 %v1032, %v2486
  %2551 = vst [vmem:[%s5] sm:$0xff] %v2487
  %2552 = vst [vmem:[%s5 + $0x8] sm:$0xff] %v2488
  %2553 = vst [vmem:[%s5 + $0x10] sm:$0xff] %v2489
  %2554 = vst [vmem:[%s5 + $0x18] sm:$0xff] %v2490
  %2555 = vst [vmem:[%s5 + $0x20] sm:$0xff] %v2491
  %2556 = vst [vmem:[%s5 + $0x28] sm:$0xff] %v2492
  %2557 = vst [vmem:[%s5 + $0x30] sm:$0xff] %v2493
  %2558 = vst [vmem:[%s5 + $0x38] sm:$0xff] %v2494
  %2559 = vst [vmem:[%s5 + $0x40] sm:$0xff] %v2495
  %2560 = vst [vmem:[%s5 + $0x48] sm:$0xff] %v2496
  %2561 = vst [vmem:[%s5 + $0x50] sm:$0xff] %v2497
  %2562 = vst [vmem:[%s5 + $0x58] sm:$0xff] %v2498
  %2563 = vst [vmem:[%s5 + $0x60] sm:$0xff] %v2499
  %2564 = vst [vmem:[%s5 + $0x68] sm:$0xff] %v2500
  %2565 = vst [vmem:[%s5 + $0x70] sm:$0xff] %v2501
  %2566 = vst [vmem:[%s5 + $0x78] sm:$0xff] %v2502
  %2567 = vst [vmem:[%s5 + $0x80] sm:$0xff] %v2503
  %2568 = vst [vmem:[%s5 + $0x88] sm:$0xff] %v2504
  %2569 = vst [vmem:[%s5 + $0x90] sm:$0xff] %v2505
  %2570 = vst [vmem:[%s5 + $0x98] sm:$0xff] %v2506
  %2571 = vst [vmem:[%s5 + $0xa0] sm:$0xff] %v2507
  %2572 = vst [vmem:[%s5 + $0xa8] sm:$0xff] %v2508
  %2573 = vst [vmem:[%s5 + $0xb0] sm:$0xff] %v2509
  %2574 = vst [vmem:[%s5 + $0xb8] sm:$0xff] %v2510
  %2575 = vst [vmem:[%s5 + $0xc0] sm:$0xff] %v2511
  %2576 = vst [vmem:[%s5 + $0xc8] sm:$0xff] %v2512
  %2577 = vst [vmem:[%s5 + $0xd0] sm:$0xff] %v2513
  %2578 = vst [vmem:[%s5 + $0xd8] sm:$0xff] %v2514
  %2579 = vst [vmem:[%s5 + $0xe0] sm:$0xff] %v2515
  %2580 = vst [vmem:[%s5 + $0xe8] sm:$0xff] %v2516
  %2581 = vst [vmem:[%s5 + $0xf0] sm:$0xff] %v2517
  %2582 = vst [vmem:[%s5 + $0xf8] sm:$0xff] %v2518
  %2583 = vst [vmem:[%s5 + $0x100] sm:$0xff] %v2519
  %2584 = vst [vmem:[%s5 + $0x108] sm:$0xff] %v2520
  %2585 = vst [vmem:[%s5 + $0x110] sm:$0xff] %v2521
  %2586 = vst [vmem:[%s5 + $0x118] sm:$0xff] %v2522
  %2587 = vst [vmem:[%s5 + $0x120] sm:$0xff] %v2523
  %2588 = vst [vmem:[%s5 + $0x128] sm:$0xff] %v2524
  %2589 = vst [vmem:[%s5 + $0x130] sm:$0xff] %v2525
  %2590 = vst [vmem:[%s5 + $0x138] sm:$0xff] %v2526
  %2591 = vst [vmem:[%s5 + $0x140] sm:$0xff] %v2527
  %2592 = vst [vmem:[%s5 + $0x148] sm:$0xff] %v2528
  %2593 = vst [vmem:[%s5 + $0x150] sm:$0xff] %v2529
  %2594 = vst [vmem:[%s5 + $0x158] sm:$0xff] %v2530
  %2595 = vst [vmem:[%s5 + $0x160] sm:$0xff] %v2531
  %2596 = vst [vmem:[%s5 + $0x168] sm:$0xff] %v2532
  %2597 = vst [vmem:[%s5 + $0x170] sm:$0xff] %v2533
  %2598 = vst [vmem:[%s5 + $0x178] sm:$0xff] %v2534
  %2599 = vst [vmem:[%s5 + $0x180] sm:$0xff] %v2535
  %2600 = vst [vmem:[%s5 + $0x188] sm:$0xff] %v2536
  %2601 = vst [vmem:[%s5 + $0x190] sm:$0xff] %v2537
  %2602 = vst [vmem:[%s5 + $0x198] sm:$0xff] %v2538
  %2603 = vst [vmem:[%s5 + $0x1a0] sm:$0xff] %v2539
  %2604 = vst [vmem:[%s5 + $0x1a8] sm:$0xff] %v2540
  %2605 = vst [vmem:[%s5 + $0x1b0] sm:$0xff] %v2541
  %2606 = vst [vmem:[%s5 + $0x1b8] sm:$0xff] %v2542
  %2607 = vst [vmem:[%s5 + $0x1c0] sm:$0xff] %v2543
  %2608 = vst [vmem:[%s5 + $0x1c8] sm:$0xff] %v2544
  %2609 = vst [vmem:[%s5 + $0x1d0] sm:$0xff] %v2545
  %2610 = vst [vmem:[%s5 + $0x1d8] sm:$0xff] %v2546
  %2611 = vst [vmem:[%s5 + $0x1e0] sm:$0xff] %v2547
  %2612 = vst [vmem:[%s5 + $0x1e8] sm:$0xff] %v2548
  %2613 = vst [vmem:[%s5 + $0x1f0] sm:$0xff] %v2549
  %2614 = vst [vmem:[%s5 + $0x1f8] sm:$0xff] %v2550
  // Predicated region
  $region22: #{frelu.1} parent=0 // pred_check
    _
  $region23: #{frelu.1} parent=0 // pred_check_branch
    %2616 = sbr.rel (0) target = $region25
  $region24: #{frelu.1} parent=0 // pred_region
    _
  $region25: #{frelu.1} parent=0 // pred_fallthru
    _
  // Predicated region
  $region26: #{frelu.1} parent=0 // pred_check
    _
  $region27: #{frelu.1} parent=0 // pred_check_branch
    %2618 = sbr.rel (0) target = $region29
  $region28: #{frelu.1} parent=0 // pred_region
    _
  $region29: #{frelu.1} parent=0 // pred_fallthru
    _

</llo_original>
